<compile_context>
chip_gen: v5e
topology: v5e:2x2
jax: 0.10.0
libtpu: 0.0.40
codegen_flags: <defaults>
</compile_context>

<pallas_src>
import math

import jax
import jax.numpy as jnp
from jax.experimental import pallas as pl
from jax.experimental.pallas import tpu as pltpu

D_MODEL = 512   # hard-coded in ISA_Block (ExternalAttention(d_model=512, S=4))
S_DIM = 4


# --------------------------------------------------------------------------
# Pallas kernel: channel-major ExternalAttention on a (C, tT) token-column tile
# --------------------------------------------------------------------------
def _ea_kernel(x_ref, wk_ref, wv_ref, o_ref):
    """x_ref/o_ref: (1, C, tT) tile; wk_ref: (S, C) = mk.weight; wv_ref: (C, S) = mv.weight.

    out[:, t] = mv.weight @ softmax_S(mk.weight @ x[:, t])   (per token column t)
    """
    x = x_ref[0].astype(jnp.float32)                         # (C, tT), tokens in lanes
    wk = wk_ref[...].astype(jnp.float32)                     # (S, C)
    wv = wv_ref[...].astype(jnp.float32)                     # (C, S)

    # attn^T = mk.weight @ x^T -> (S, tT); S=4 lives in sublanes, tokens lane-dense.
    attn = jnp.dot(wk, x, preferred_element_type=jnp.float32)
    # softmax over S (reference nn.Softmax(dim=3)); plain divide on the tiny tile.
    m = jnp.max(attn, axis=0, keepdims=True)
    e = jnp.exp(attn - m)
    p = e / jnp.sum(e, axis=0, keepdims=True)
    # NOTE: the reference's extra `attn / attn.sum(dim=3)` after softmax(dim=3)
    # is a mathematical no-op (the sum is exactly 1) -> dropped per perf review.

    # out^T = mv.weight @ p -> (C, tT)
    out = jnp.dot(wv, p, preferred_element_type=jnp.float32)
    o_ref[0, :, :] = out.astype(o_ref.dtype)


def _device_tuning():
    """(token-tile target, vmem_limit_bytes) chosen per TPU generation.

    v6e / v7x: 2048-token tiles (halves the ~0.35us/step pipeline overhead) with
    a raised 48 MiB scoped-VMEM limit (peak ~22-26 MiB, under 64 MiB physical).
    v5e / older / unknown: 1024-token tiles fit the 16 MiB scoped-VMEM default.
    """
    kind = ""
    try:
        kind = jax.devices()[0].device_kind.lower()
    except Exception:
        pass
    if "v6" in kind or "v7" in kind:
        return 2048, 48 * 1024 * 1024
    return 1024, None


def external_attention_cmajor(x, wk, wv, *, t_target, vmem_limit_bytes=None):
    """Apply ExternalAttention over the channel axis of x.

    x:  (B, C, T)  channel-major slabs; each column x[b, :, t] is one token.
    wk: (S, C)     mk.weight  (PyTorch layout, used untransposed)
    wv: (C, S)     mv.weight  (PyTorch layout, used untransposed)
    Returns (B, C, T) with out[b, :, t] = EA(x[b, :, t]).
    """
    b, c, t = x.shape
    s = wk.shape[0]

    # Token tile: full T when it fits, else a 128-aligned target tile with a
    # ragged trailing block (no jnp.pad / slice copies).
    tt = t if t <= t_target else t_target
    grid = (b, pl.cdiv(t, tt))

    itemsize = jnp.dtype(x.dtype).itemsize
    cost = pl.CostEstimate(
        flops=4 * b * t * c * s,                 # two small matmuls per token
        transcendentals=b * t * s,               # exp in softmax
        bytes_accessed=2 * b * c * t * itemsize + 2 * c * s * 4,
    )

    return pl.pallas_call(
        _ea_kernel,
        out_shape=jax.ShapeDtypeStruct((b, c, t), x.dtype),
        grid=grid,
        in_specs=[
            pl.BlockSpec((1, c, tt), lambda bi, ti: (bi, 0, ti)),   # token-column tile
            pl.BlockSpec((s, c), lambda bi, ti: (0, 0)),            # mk.weight (whole)
            pl.BlockSpec((c, s), lambda bi, ti: (0, 0)),            # mv.weight (whole)
        ],
        out_specs=pl.BlockSpec((1, c, tt), lambda bi, ti: (bi, 0, ti)),
        compiler_params=pltpu.CompilerParams(
            dimension_semantics=("parallel", "parallel"),
            vmem_limit_bytes=vmem_limit_bytes,
        ),
        cost_estimate=cost,
    )(x, wk, wv)


# --------------------------------------------------------------------------
# ISA_Block wrapper (faithful to the reference permute/view chain)
# --------------------------------------------------------------------------
def isa_block(x, params, down_factor=(2, 2), stream_dtype=None,
              t_target=None, vmem_limit_bytes=None):
    """ISA_Block.forward.  x is NCHW with C == 512 (hard-coded in the reference)."""
    n, c, h, w = x.shape
    if c != D_MODEL:
        raise ValueError(f"ISA_Block hard-codes d_model={D_MODEL}; got C={c}")
    dh, dw = down_factor
    out_h, out_w = math.ceil(h / dh), math.ceil(w / dw)
    pad_h, pad_w = out_h * dh - h, out_w * dw - w
    hp, wp = out_h * dh, out_w * dw

    if t_target is None or vmem_limit_bytes is None:
        d_tt, d_vmem = _device_tuning()
        if t_target is None:
            t_target = d_tt
        if vmem_limit_bytes is None:
            vmem_limit_bytes = d_vmem

    feats = x if stream_dtype is None else x.astype(stream_dtype)
    if pad_h > 0 or pad_w > 0:
        feats = jnp.pad(feats, ((0, 0), (0, 0),
                                (pad_h // 2, pad_h - pad_h // 2),
                                (pad_w // 2, pad_w - pad_w // 2)))

    wk_l, wv_l = params["wk_long"], params["wv_long"]      # (S, C), (C, S)
    wk_s, wv_s = params["wk_short"], params["wv_short"]    # (S, C), (C, S)

    # ---- long-range EA, computed directly on the padded NCHW slab (C-major).
    # The reference's pre/post token reorderings around long_range_sa are pure
    # relayouts of independent tokens -> skipped entirely.
    y1 = external_attention_cmajor(
        feats.reshape(n, c, hp * wp), wk_l, wv_l,
        t_target=t_target, vmem_limit_bytes=vmem_limit_bytes)

    # ---- the one relayout the reference semantics force between the two EAs:
    # the raw `.view(n, dh, dw, c, out_h, out_w)` on the token-major
    # (n,p,q,oh,ow,c) buffer MIXES the (oh,ow,c) axes into (c',oh',ow').
    # Expressed as exactly one transpose copy (the reshapes are bitcasts).
    t6 = y1.reshape(n, c, out_h, dh, out_w, dw)
    t6 = jnp.transpose(t6, (0, 3, 5, 2, 4, 1))            # (n, dh, dw, out_h, out_w, c)
    i2 = t6.reshape(n * dh * dw, c, out_h * out_w)        # free reshape == the .view mixing

    # ---- short-range EA, C-major on the per-(n,p,q) (C, out_h*out_w) slabs.
    y2 = external_attention_cmajor(
        i2, wk_s, wv_s,
        t_target=t_target, vmem_limit_bytes=vmem_limit_bytes)

    # ---- back to NCHW: one transpose copy (+ crop of the padding).
    # TODO(synk): this transpose, the mid relayout, and pad/crop stay as plain
    # XLA ops; BlockSpec cannot express those element-level permutations.
    u6 = y2.reshape(n, dh, dw, c, out_h, out_w)
    f6 = jnp.transpose(u6, (0, 3, 4, 1, 5, 2))            # (n, c, out_h, dh, out_w, dw)
    out = f6.reshape(n, c, hp, wp)
    if pad_h > 0 or pad_w > 0:
        out = out[:, :, pad_h // 2: pad_h // 2 + h, pad_w // 2: pad_w // 2 + w]
    return out.astype(x.dtype)


# --------------------------------------------------------------------------
# Pure-JAX reference (mirrors the PyTorch permute/view chain op-for-op)
# --------------------------------------------------------------------------
def _isa_block_reference(x, params, down_factor=(2, 2)):
    n, c, h, w = x.shape
    dh, dw = down_factor
    out_h, out_w = math.ceil(h / dh), math.ceil(w / dw)
    pad_h, pad_w = out_h * dh - h, out_w * dw - w
    f = x
    if pad_h > 0 or pad_w > 0:
        f = jnp.pad(f, ((0, 0), (0, 0),
                        (pad_h // 2, pad_h - pad_h // 2),
                        (pad_w // 2, pad_w - pad_w // 2)))

    hi = jax.lax.Precision.HIGHEST

    def ea(q, wk, wv):                                    # q: (B, a, b, C)
        attn = jnp.einsum("bhwd,sd->bhws", q, wk, precision=hi)
        attn = jax.nn.softmax(attn, axis=3)
        attn = attn / jnp.sum(attn, axis=3, keepdims=True)
        return jnp.einsum("bhws,ds->bhwd", attn, wv, precision=hi)

    f = f.reshape(n, c, out_h, dh, out_w, dw)
    f = jnp.transpose(f, (0, 3, 5, 1, 2, 4)).reshape(-1, c, out_h, out_w)
    f = jnp.transpose(f, (0, 2, 3, 1))
    f = ea(f, params["wk_long"], params["wv_long"])
    f = f.reshape(n, dh, dw, c, out_h, out_w)
    f = jnp.transpose(f, (0, 4, 5, 3, 1, 2)).reshape(-1, c, dh, dw)
    f = jnp.transpose(f, (0, 2, 3, 1))
    f = ea(f, params["wk_short"], params["wv_short"])
    f = jnp.transpose(f, (0, 3, 1, 2))
    f = f.reshape(n, out_h, out_w, c, dh, dw)
    f = jnp.transpose(f, (0, 3, 1, 4, 2, 5)).reshape(n, c, dh * out_h, dw * out_w)
    if pad_h > 0 or pad_w > 0:
        f = f[:, :, pad_h // 2: pad_h // 2 + h, pad_w // 2: pad_w // 2 + w]
    return f


if __name__ == "__main__":
    key = jax.random.PRNGKey(0)
    k1, k2, k3, k4, kx = jax.random.split(key, 5)
    # nn.Linear weights: init.normal_(std=0.001), no bias; PyTorch layouts:
    # mk.weight (S, d_model), mv.weight (d_model, S).
    params = {
        "wk_long":  0.001 * jax.random.normal(k1, (S_DIM, D_MODEL), jnp.float32),
        "wv_long":  0.001 * jax.random.normal(k2, (D_MODEL, S_DIM), jnp.float32),
        "wk_short": 0.001 * jax.random.normal(k3, (S_DIM, D_MODEL), jnp.float32),
        "wv_short": 0.001 * jax.random.normal(k4, (D_MODEL, S_DIM), jnp.float32),
    }

    # Small spatial shape; odd height exercises the pad + crop path.
    n, c, h, w = 2, D_MODEL, 7, 6
    x = jax.random.normal(kx, (n, c, h, w), jnp.float32)

    out = jax.block_until_ready(jax.jit(isa_block)(x, params))
    assert out.shape == (n, D_MODEL, h, w), out.shape
    assert bool(jnp.all(jnp.isfinite(out)))

    ref = _isa_block_reference(x, params)
    err = float(jnp.max(jnp.abs(out - ref)))
    assert bool(jnp.allclose(out, ref, rtol=2e-3, atol=1e-6)), f"max abs err {err}"

    print("KERNEL_OK")
</pallas_src>

<mosaic_0001>
module attributes {stable_mosaic.version = 11 : i64} {
  func.func @_ea_kernel(%arg0: i32, %arg1: i32, %arg2: memref<1x512x48xf32, #tpu.memory_space<vmem>>, %arg3: memref<4x512xf32, #tpu.memory_space<vmem>>, %arg4: memref<512x4xf32, #tpu.memory_space<vmem>>, %arg5: memref<1x512x48xf32, #tpu.memory_space<vmem>>) attributes {dimension_semantics = [#tpu.dimension_semantics<parallel>, #tpu.dimension_semantics<parallel>], iteration_bounds = array<i64: 2, 1>, scalar_prefetch = 0 : i64, scratch_operands = 0 : i64, tpu.core_type = #tpu.core_type<tc>, window_params = [{transform_indices = @transform_0, window_bounds = array<i64: 1, 512, 48>}, {pipeline_mode = #tpu.pipeline_mode<synchronous>, transform_indices = @transform_1, window_bounds = array<i64: 4, 512>}, {pipeline_mode = #tpu.pipeline_mode<synchronous>, transform_indices = @transform_2, window_bounds = array<i64: 512, 4>}, {transform_indices = @transform_3, window_bounds = array<i64: 1, 512, 48>}]} {
    %c0 = arith.constant 0 : index
    %c0_0 = arith.constant 0 : index
    %c0_1 = arith.constant 0 : index
    %0 = vector.load %arg2[%c0, %c0_0, %c0_1] : memref<1x512x48xf32, #tpu.memory_space<vmem>>, vector<1x512x48xf32>
    %1 = vector.shape_cast %0 : vector<1x512x48xf32> to vector<512x48xf32>
    %c0_2 = arith.constant 0 : index
    %c0_3 = arith.constant 0 : index
    %2 = vector.load %arg3[%c0_2, %c0_3] : memref<4x512xf32, #tpu.memory_space<vmem>>, vector<4x512xf32>
    %c0_4 = arith.constant 0 : index
    %c0_5 = arith.constant 0 : index
    %3 = vector.load %arg4[%c0_4, %c0_5] : memref<512x4xf32, #tpu.memory_space<vmem>>, vector<512x4xf32>
    %cst = arith.constant dense<0.000000e+00> : vector<4x48xf32>
    %4 = tpu.matmul %2, %1, %cst {dimension_numbers = #tpu.dot_dimension_numbers<[1], [0], [0], [1], [0, 0, 1, 1], [], []>} : vector<4x512xf32>, vector<512x48xf32>, vector<4x48xf32> -> vector<4x48xf32>
    %cst_6 = arith.constant dense<0xFF800000> : vector<48xf32>
    %5 = vector.multi_reduction <maximumf>, %4, %cst_6 [0] : vector<4x48xf32> to vector<48xf32>
    %6 = vector.shape_cast %5 : vector<48xf32> to vector<1x48xf32>
    %7 = vector.broadcast %6 : vector<1x48xf32> to vector<4x48xf32>
    %8 = arith.subf %4, %7 : vector<4x48xf32>
    %9 = math.exp %8 : vector<4x48xf32>
    %cst_7 = arith.constant dense<0.000000e+00> : vector<48xf32>
    %10 = vector.multi_reduction <add>, %9, %cst_7 [0] : vector<4x48xf32> to vector<48xf32>
    %11 = vector.shape_cast %10 : vector<48xf32> to vector<1x48xf32>
    %12 = vector.broadcast %11 : vector<1x48xf32> to vector<4x48xf32>
    %13 = arith.divf %9, %12 : vector<4x48xf32>
    %cst_8 = arith.constant dense<0.000000e+00> : vector<512x48xf32>
    %14 = tpu.matmul %3, %13, %cst_8 {dimension_numbers = #tpu.dot_dimension_numbers<[1], [0], [0], [1], [0, 0, 1, 1], [], []>} : vector<512x4xf32>, vector<4x48xf32>, vector<512x48xf32> -> vector<512x48xf32>
    %c0_9 = arith.constant 0 : index
    %c0_10 = arith.constant 0 : index
    %c0_11 = arith.constant 0 : index
    %15 = vector.load %arg5[%c0_9, %c0_10, %c0_11] : memref<1x512x48xf32, #tpu.memory_space<vmem>>, vector<1x512x48xf32>
    %16 = vector.shape_cast %15 : vector<1x512x48xf32> to vector<512x48xf32>
    %17 = vector.shape_cast %14 : vector<512x48xf32> to vector<1x512x48xf32>
    tpu.vector_store %arg5[%c0_9, %c0_10, %c0_11], %17 {strides = array<i32>} : memref<1x512x48xf32, #tpu.memory_space<vmem>>, vector<1x512x48xf32>,
    return
  }
  func.func @transform_0(%arg0: i32, %arg1: i32) -> (i32, i32, i32) {
    %c0_i32 = arith.constant 0 : i32
    %c0_i32_0 = arith.constant 0 : i32
    return %arg0, %c0_i32, %arg1 : i32, i32, i32
  }
  func.func @transform_1(%arg0: i32, %arg1: i32) -> (i32, i32) {
    %c0_i32 = arith.constant 0 : i32
    %c0_i32_0 = arith.constant 0 : i32
    %c0_i32_1 = arith.constant 0 : i32
    return %c0_i32, %c0_i32_0 : i32, i32
  }
  func.func @transform_2(%arg0: i32, %arg1: i32) -> (i32, i32) {
    %c0_i32 = arith.constant 0 : i32
    %c0_i32_0 = arith.constant 0 : i32
    %c0_i32_1 = arith.constant 0 : i32
    return %c0_i32, %c0_i32_0 : i32, i32
  }
  func.func @transform_3(%arg0: i32, %arg1: i32) -> (i32, i32, i32) {
    %c0_i32 = arith.constant 0 : i32
    %c0_i32_0 = arith.constant 0 : i32
    return %arg0, %c0_i32, %arg1 : i32, i32, i32
  }
}

module attributes {stable_mosaic.version = 11 : i64} {
  func.func @_ea_kernel(%arg0: i32, %arg1: i32, %arg2: memref<1x512x12xf32, #tpu.memory_space<vmem>>, %arg3: memref<4x512xf32, #tpu.memory_space<vmem>>, %arg4: memref<512x4xf32, #tpu.memory_space<vmem>>, %arg5: memref<1x512x12xf32, #tpu.memory_space<vmem>>) attributes {dimension_semantics = [#tpu.dimension_semantics<parallel>, #tpu.dimension_semantics<parallel>], iteration_bounds = array<i64: 8, 1>, scalar_prefetch = 0 : i64, scratch_operands = 0 : i64, tpu.core_type = #tpu.core_type<tc>, window_params = [{transform_indices = @transform_0, window_bounds = array<i64: 1, 512, 12>}, {pipeline_mode = #tpu.pipeline_mode<synchronous>, transform_indices = @transform_1, window_bounds = array<i64: 4, 512>}, {pipeline_mode = #tpu.pipeline_mode<synchronous>, transform_indices = @transform_2, window_bounds = array<i64: 512, 4>}, {transform_indices = @transform_3, window_bounds = array<i64: 1, 512, 12>}]} {
    %c0 = arith.constant 0 : index
    %c0_0 = arith.constant 0 : index
    %c0_1 = arith.constant 0 : index
    %0 = vector.load %arg2[%c0, %c0_0, %c0_1] : memref<1x512x12xf32, #tpu.memory_space<vmem>>, vector<1x512x12xf32>
    %1 = vector.shape_cast %0 : vector<1x512x12xf32> to vector<512x12xf32>
    %c0_2 = arith.constant 0 : index
    %c0_3 = arith.constant 0 : index
    %2 = vector.load %arg3[%c0_2, %c0_3] : memref<4x512xf32, #tpu.memory_space<vmem>>, vector<4x512xf32>
    %c0_4 = arith.constant 0 : index
    %c0_5 = arith.constant 0 : index
    %3 = vector.load %arg4[%c0_4, %c0_5] : memref<512x4xf32, #tpu.memory_space<vmem>>, vector<512x4xf32>
    %cst = arith.constant dense<0.000000e+00> : vector<4x12xf32>
    %4 = tpu.matmul %2, %1, %cst {dimension_numbers = #tpu.dot_dimension_numbers<[1], [0], [0], [1], [0, 0, 1, 1], [], []>} : vector<4x512xf32>, vector<512x12xf32>, vector<4x12xf32> -> vector<4x12xf32>
    %cst_6 = arith.constant dense<0xFF800000> : vector<12xf32>
    %5 = vector.multi_reduction <maximumf>, %4, %cst_6 [0] : vector<4x12xf32> to vector<12xf32>
    %6 = vector.shape_cast %5 : vector<12xf32> to vector<1x12xf32>
    %7 = vector.broadcast %6 : vector<1x12xf32> to vector<4x12xf32>
    %8 = arith.subf %4, %7 : vector<4x12xf32>
    %9 = math.exp %8 : vector<4x12xf32>
    %cst_7 = arith.constant dense<0.000000e+00> : vector<12xf32>
    %10 = vector.multi_reduction <add>, %9, %cst_7 [0] : vector<4x12xf32> to vector<12xf32>
    %11 = vector.shape_cast %10 : vector<12xf32> to vector<1x12xf32>
    %12 = vector.broadcast %11 : vector<1x12xf32> to vector<4x12xf32>
    %13 = arith.divf %9, %12 : vector<4x12xf32>
    %cst_8 = arith.constant dense<0.000000e+00> : vector<512x12xf32>
    %14 = tpu.matmul %3, %13, %cst_8 {dimension_numbers = #tpu.dot_dimension_numbers<[1], [0], [0], [1], [0, 0, 1, 1], [], []>} : vector<512x4xf32>, vector<4x12xf32>, vector<512x12xf32> -> vector<512x12xf32>
    %c0_9 = arith.constant 0 : index
    %c0_10 = arith.constant 0 : index
    %c0_11 = arith.constant 0 : index
    %15 = vector.load %arg5[%c0_9, %c0_10, %c0_11] : memref<1x512x12xf32, #tpu.memory_space<vmem>>, vector<1x512x12xf32>
    %16 = vector.shape_cast %15 : vector<1x512x12xf32> to vector<512x12xf32>
    %17 = vector.shape_cast %14 : vector<512x12xf32> to vector<1x512x12xf32>
    tpu.vector_store %arg5[%c0_9, %c0_10, %c0_11], %17 {strides = array<i32>} : memref<1x512x12xf32, #tpu.memory_space<vmem>>, vector<1x512x12xf32>,
    return
  }
  func.func @transform_0(%arg0: i32, %arg1: i32) -> (i32, i32, i32) {
    %c0_i32 = arith.constant 0 : i32
    %c0_i32_0 = arith.constant 0 : i32
    return %arg0, %c0_i32, %arg1 : i32, i32, i32
  }
  func.func @transform_1(%arg0: i32, %arg1: i32) -> (i32, i32) {
    %c0_i32 = arith.constant 0 : i32
    %c0_i32_0 = arith.constant 0 : i32
    %c0_i32_1 = arith.constant 0 : i32
    return %c0_i32, %c0_i32_0 : i32, i32
  }
  func.func @transform_2(%arg0: i32, %arg1: i32) -> (i32, i32) {
    %c0_i32 = arith.constant 0 : i32
    %c0_i32_0 = arith.constant 0 : i32
    %c0_i32_1 = arith.constant 0 : i32
    return %c0_i32, %c0_i32_0 : i32, i32
  }
  func.func @transform_3(%arg0: i32, %arg1: i32) -> (i32, i32, i32) {
    %c0_i32 = arith.constant 0 : i32
    %c0_i32_0 = arith.constant 0 : i32
    return %arg0, %c0_i32, %arg1 : i32, i32, i32
  }
}

</mosaic_0001>

<llo_original>
// kernel: isa_block.2
$region0: #{isa_block.2}
  #allocation0 [shape = 'u32[]', space=smem, size = 0x4, offset = 0x4, fixed_abs, tag = 'smem constant byte address 0x4 - core index']
  #allocation1 [shape = 'u32[72,128]{1,0:T(1,128)}', space=vmem, size = 0x9000, scoped, tag = 'internal scratch']
  %s0 = inlined_call_operand.vmem [shape: f32[2,512,48], index: 0, kind: input, shape index: {}]
  %s1 = inlined_call_operand.hbm [shape: f32[4,512], index: 1, kind: input, shape index: {}]
  %s2 = inlined_call_operand.vmem [shape: f32[512,4], index: 2, kind: input, shape index: {}]
  %s3 = inlined_call_operand.vmem [shape: f32[2,512,48], index: 3, kind: output, shape index: {}]
  %s4 = sld [smem:[#allocation0]]
  $region49: #{isa_block.2} parent=0
    _
  %s6 = ssub.s32 1, %s4
  %s7 = scalar_select 0, %s6, %s4
  $region1: #{isa_block.2} parent=0
    #allocation2 [shape = 'u8[8192]{0}', space=vmem, size = 0x2000, scoped, tag = 'input window, operand 1, single buffered']
    #allocation3 [shape = 's32[2]{0}', space=sflag, size = 0x8, scoped, tag = 'scoped memory for isa_block.2']
    %8 = vsyncpa [#allocation3], 0
    loop: start=0, step=1, limit=4
    $region2: #{isa_block.2} parent=1 // loop_pre_header
      _
    $region3: #{isa_block.2} parent=1 // loop_header
      %s10 = sphi 0, %s14
      %p11 = scmp.ge.s32.totalorder %s10, 4
      %s17 = sphi 0, %s29
      %s18 = sphi 0, %s25
      %s19 = sphi 0, %s17
      %s20 = sphi 0, %s18
      %s21 = sphi 0, %s19
      %s22 = sphi 0, %s20
      %s34 = sphi 0, %s36
      %s37 = sphi 0, %s34
      %s38 = sphi 0, %s37
      %s54 = sphi 0, %s38
      %s58 = sphi 0, %s58
      %s60 = sphi 0, %s58
      %s61 = sphi 0, %s60
      %s75 = sphi 0, %s61
      %s79 = sphi 0, %s79
      %s81 = sphi 0, %s79
      %s82 = sphi 0, %s81
      %s96 = sphi 0, %s82
      %s104 = sphi 0, %s106
      %s107 = sphi 0, %s104
      %s108 = sphi 0, %s107
      %s124 = sphi 0, %s108
    $region4: #{isa_block.2} parent=1 // loop_header_branch
      %13 = sbr.rel (%p11) target = $region8
    $region5: #{isa_block.2} parent=1 // loop_body
      %s15 = ssub.s32 %s10, 1
      %s16 = ssub.s32 %s10, 2
      %s23 = sadd.s32 1, %s18
      %p24 = scmp.ge.s32.totalorder %s23, 1
      %s25 = scalar_select %p24, 0, %s23
      %s26 = sadd.s32 1, %s17
      %s27 = scalar_select %p24, %s26, %s17
      %p28 = scmp.ge.s32.totalorder %s27, 2
      %s29 = scalar_select %p28, 0, %s27
      %s30 = ssub.s32 %s17, %s29
      %s31 = ssub.s32 %s18, %s25
      %s32 = sor.u32 %s30, %s31
      %p33 = scmp.eq.s32.totalorder %s32, 0
      %s35 = sadd.s32 %s34, 1
      %s36 = scalar_select %p33, %s34, %s35
      %p39 = pneg %p33
      %p40 = scmp.eq.s32.totalorder %s10, 1
      %p41 = por %p39, %p40
      %p42 = scmp.ne.s32.totalorder %s34, %s37
      %p43 = scmp.eq.s32.totalorder %s10, 0
      %p44 = por %p42, %p43
      %p45 = scmp.ne.s32.totalorder %s34, %s37
      %p46 = scmp.eq.s32.totalorder %s15, 1
      %p47 = por %p45, %p46
      %p48 = scmp.ne.s32.totalorder %s37, %s38
      %p49 = scmp.eq.s32.totalorder %s15, 0
      %p50 = por %p48, %p49
      %p51 = scmp.ne.s32.totalorder %s37, %s38
      %p52 = scmp.eq.s32.totalorder %s16, 1
      %p53 = por %p51, %p52
      %p55 = scmp.ne.s32.totalorder %s38, %s54
      %p56 = scmp.eq.s32.totalorder %s16, 0
      %p57 = por %p55, %p56
      %s59 = sadd.s32 %s58, 1
      %p62 = scmp.eq.s32.totalorder %s10, 1
      %p63 = scmp.ne.s32.totalorder %s58, %s60
      %p64 = scmp.eq.s32.totalorder %s10, 0
      %p65 = por %p63, %p64
      %p66 = scmp.ne.s32.totalorder %s58, %s60
      %p67 = scmp.eq.s32.totalorder %s15, 1
      %p68 = por %p66, %p67
      %p69 = scmp.ne.s32.totalorder %s60, %s61
      %p70 = scmp.eq.s32.totalorder %s15, 0
      %p71 = por %p69, %p70
      %p72 = scmp.ne.s32.totalorder %s60, %s61
      %p73 = scmp.eq.s32.totalorder %s16, 1
      %p74 = por %p72, %p73
      %p76 = scmp.ne.s32.totalorder %s61, %s75
      %p77 = scmp.eq.s32.totalorder %s16, 0
      %p78 = por %p76, %p77
      %s80 = sadd.s32 %s79, 1
      %p83 = scmp.eq.s32.totalorder %s10, 1
      %p84 = scmp.ne.s32.totalorder %s79, %s81
      %p85 = scmp.eq.s32.totalorder %s10, 0
      %p86 = por %p84, %p85
      %p87 = scmp.ne.s32.totalorder %s79, %s81
      %p88 = scmp.eq.s32.totalorder %s15, 1
      %p89 = por %p87, %p88
      %p90 = scmp.ne.s32.totalorder %s81, %s82
      %p91 = scmp.eq.s32.totalorder %s15, 0
      %p92 = por %p90, %p91
      %p93 = scmp.ne.s32.totalorder %s81, %s82
      %p94 = scmp.eq.s32.totalorder %s16, 1
      %p95 = por %p93, %p94
      %p97 = scmp.ne.s32.totalorder %s82, %s96
      %p98 = scmp.eq.s32.totalorder %s16, 0
      %p99 = por %p97, %p98
      %s100 = ssub.s32 %s17, %s29
      %s101 = ssub.s32 %s18, %s25
      %s102 = sor.u32 %s100, %s101
      %p103 = scmp.eq.s32.totalorder %s102, 0
      %s105 = sadd.s32 %s104, 1
      %s106 = scalar_select %p103, %s104, %s105
      %p109 = pneg %p103
      %p110 = scmp.eq.s32.totalorder %s10, 1
      %p111 = por %p109, %p110
      %p112 = scmp.ne.s32.totalorder %s104, %s107
      %p113 = scmp.eq.s32.totalorder %s10, 0
      %p114 = por %p112, %p113
      %p115 = scmp.ne.s32.totalorder %s104, %s107
      %p116 = scmp.eq.s32.totalorder %s15, 1
      %p117 = por %p115, %p116
      %p118 = scmp.ne.s32.totalorder %s107, %s108
      %p119 = scmp.eq.s32.totalorder %s15, 0
      %p120 = por %p118, %p119
      %p121 = scmp.ne.s32.totalorder %s107, %s108
      %p122 = scmp.eq.s32.totalorder %s16, 1
      %p123 = por %p121, %p122
      %p125 = scmp.ne.s32.totalorder %s108, %s124
      %p126 = scmp.eq.s32.totalorder %s16, 0
      %p127 = por %p125, %p126
      %p128 = scmp.le.s32.totalorder 1, %s10
      %p129 = scmp.lt.s32.totalorder %s10, 3
      %p130 = pnand %p128, %p129
      %p131 = pneg %p130
      // Predicated region
      $region9: #{isa_block.2} parent=5 // pred_check
        _
      $region10: #{isa_block.2} parent=5 // pred_check_branch
        %133 = sbr.rel (%p130) target = $region12
      $region11: #{isa_block.2} parent=5 // pred_region
        %s134 = ssub.s32 %s10, 1
        // Predicated region
        $region13: #{isa_block.2} parent=11 // pred_check
          %p135 = pneg %p71
        $region14: #{isa_block.2} parent=11 // pred_check_branch
          %137 = sbr.rel (%p135) target = $region16
        $region15: #{isa_block.2} parent=11 // pred_region
          %139 = vsyncadd [#allocation3], 0
          %s141 = sshll.u32 %s1, 4
          %s142 = int_to_ptr.hbm [resolvable:$true] %s141
          %s143 = sshll.u32 [#allocation2], 4
          %s144 = int_to_ptr.vmem [resolvable:$true] %s143
          %146 = dma.hbm_to_vmem [thread:$0]  %s142, 256, %s144, [#allocation3]
        $region16: #{isa_block.2} parent=11 // pred_fallthru
          _
        // Predicated region
        $region17: #{isa_block.2} parent=11 // pred_check
          %p147 = pneg %p92
        $region18: #{isa_block.2} parent=11 // pred_check_branch
          %149 = sbr.rel (%p147) target = $region20
        $region19: #{isa_block.2} parent=11 // pred_region
          _
        $region20: #{isa_block.2} parent=11 // pred_fallthru
          _
      $region12: #{isa_block.2} parent=5 // pred_fallthru
        _
      %p150 = scmp.lt.s32.totalorder %s10, 2
      // Predicated region
      $region21: #{isa_block.2} parent=5 // pred_check
        %p151 = pneg %p150
      $region22: #{isa_block.2} parent=5 // pred_check_branch
        %153 = sbr.rel (%p151) target = $region24
      $region23: #{isa_block.2} parent=5 // pred_region
        // Predicated region
        $region25: #{isa_block.2} parent=23 // pred_check
          %p154 = pneg %p44
        $region26: #{isa_block.2} parent=23 // pred_check_branch
          %156 = sbr.rel (%p154) target = $region28
        $region27: #{isa_block.2} parent=23 // pred_region
          %p157 = scmp.lt.s32.totalorder %s17, 1
          %s158 = scalar_select %p157, %s17, 1
          %p159 = scmp.lt.s32.totalorder %s18, 0
          %s160 = scalar_select %p159, %s18, 0
          %s161 = smul.addr %s158, 64
          %s162 = sadd.s32 %s160, %s161
          %s163 = smul.addr %s162, 8
          %s164 = scalar_lea.vmem %s0, %s163
        $region28: #{isa_block.2} parent=23 // pred_fallthru
          _
      $region24: #{isa_block.2} parent=5 // pred_fallthru
        _
      %p165 = scmp.le.s32.totalorder 1, %s10
      %p166 = scmp.lt.s32.totalorder %s10, 3
      %p167 = pnand %p165, %p166
      %p168 = pneg %p167
      // Predicated region
      $region29: #{isa_block.2} parent=5 // pred_check
        _
      $region30: #{isa_block.2} parent=5 // pred_check_branch
        %170 = sbr.rel (%p167) target = $region32
      $region31: #{isa_block.2} parent=5 // pred_region
        %s171 = ssub.s32 %s10, 1
        // Predicated region
        $region33: #{isa_block.2} parent=31 // pred_check
          %p172 = pneg %p71
        $region34: #{isa_block.2} parent=31 // pred_check_branch
          %174 = sbr.rel (%p172) target = $region36
        $region35: #{isa_block.2} parent=31 // pred_region
          %176 = dma.done [#allocation3], 256
        $region36: #{isa_block.2} parent=31 // pred_fallthru
          _
        %p177 = scmp.lt.s32.totalorder %s19, 1
        %s178 = scalar_select %p177, %s19, 1
        %p179 = scmp.lt.s32.totalorder %s20, 0
        %s180 = scalar_select %p179, %s20, 0
        %s181 = smul.addr %s178, 64
        %s182 = sadd.s32 %s180, %s181
        %s183 = smul.addr %s182, 8
        %s184 = scalar_lea.vmem %s0, %s183
        %p185 = pneg %p50
        %p186 = pneg %p47
        %p187 = pneg %p71
        %p188 = pneg %p68
        %p189 = pneg %p92
        %p190 = pneg %p89
        %p191 = pneg %p120
        %p192 = pneg %p117
        %p193 = scmp.lt.s32.totalorder %s19, 1
        %s194 = scalar_select %p193, %s19, 1
        %p195 = scmp.lt.s32.totalorder %s20, 0
        %s196 = scalar_select %p195, %s20, 0
        %s197 = smul.addr %s194, 64
        %s198 = sadd.s32 %s196, %s197
        %s199 = smul.addr %s198, 8
        %s200 = scalar_lea.vmem %s3, %s199
        %p201 = scmp.lt.s32.totalorder %s19, 1
        %s202 = scalar_select %p201, %s19, 1
        %p203 = scmp.lt.s32.totalorder %s20, 0
        %s204 = scalar_select %p203, %s20, 0
        %s205 = smul.addr %s202, 64
        %s206 = sadd.s32 %s204, %s205
        %s207 = smul.addr %s206, 8
        %s208 = scalar_lea.vmem %s0, %s207
        %p209 = scmp.lt.s32.totalorder %s19, 1
        %s210 = scalar_select %p209, %s19, 1
        %p211 = scmp.lt.s32.totalorder %s20, 0
        %s212 = scalar_select %p211, %s20, 0
        %s213 = smul.addr %s210, 64
        %s214 = sadd.s32 %s212, %s213
        %s215 = smul.addr %s214, 8
        %s216 = scalar_lea.vmem %s3, %s215
        %v217 = vld [vmem:[%s208] sm:$0xff]
        %v218 = vld [vmem:[%s208 + $0x8] sm:$0xff]
        %v219 = vld [vmem:[%s208 + $0x10] sm:$0xff]
        %v220 = vld [vmem:[%s208 + $0x18] sm:$0xff]
        %v221 = vld [vmem:[%s208 + $0x20] sm:$0xff]
        %v222 = vld [vmem:[%s208 + $0x28] sm:$0xff]
        %v223 = vld [vmem:[%s208 + $0x30] sm:$0xff]
        %v224 = vld [vmem:[%s208 + $0x38] sm:$0xff]
        %v225 = vld [vmem:[%s208 + $0x40] sm:$0xff]
        %v226 = vld [vmem:[%s208 + $0x48] sm:$0xff]
        %v227 = vld [vmem:[%s208 + $0x50] sm:$0xff]
        %v228 = vld [vmem:[%s208 + $0x58] sm:$0xff]
        %v229 = vld [vmem:[%s208 + $0x60] sm:$0xff]
        %v230 = vld [vmem:[%s208 + $0x68] sm:$0xff]
        %v231 = vld [vmem:[%s208 + $0x70] sm:$0xff]
        %v232 = vld [vmem:[%s208 + $0x78] sm:$0xff]
        %v233 = vld [vmem:[%s208 + $0x80] sm:$0xff]
        %v234 = vld [vmem:[%s208 + $0x88] sm:$0xff]
        %v235 = vld [vmem:[%s208 + $0x90] sm:$0xff]
        %v236 = vld [vmem:[%s208 + $0x98] sm:$0xff]
        %v237 = vld [vmem:[%s208 + $0xa0] sm:$0xff]
        %v238 = vld [vmem:[%s208 + $0xa8] sm:$0xff]
        %v239 = vld [vmem:[%s208 + $0xb0] sm:$0xff]
        %v240 = vld [vmem:[%s208 + $0xb8] sm:$0xff]
        %v241 = vld [vmem:[%s208 + $0xc0] sm:$0xff]
        %v242 = vld [vmem:[%s208 + $0xc8] sm:$0xff]
        %v243 = vld [vmem:[%s208 + $0xd0] sm:$0xff]
        %v244 = vld [vmem:[%s208 + $0xd8] sm:$0xff]
        %v245 = vld [vmem:[%s208 + $0xe0] sm:$0xff]
        %v246 = vld [vmem:[%s208 + $0xe8] sm:$0xff]
        %v247 = vld [vmem:[%s208 + $0xf0] sm:$0xff]
        %v248 = vld [vmem:[%s208 + $0xf8] sm:$0xff]
        %v249 = vld [vmem:[%s208 + $0x100] sm:$0xff]
        %v250 = vld [vmem:[%s208 + $0x108] sm:$0xff]
        %v251 = vld [vmem:[%s208 + $0x110] sm:$0xff]
        %v252 = vld [vmem:[%s208 + $0x118] sm:$0xff]
        %v253 = vld [vmem:[%s208 + $0x120] sm:$0xff]
        %v254 = vld [vmem:[%s208 + $0x128] sm:$0xff]
        %v255 = vld [vmem:[%s208 + $0x130] sm:$0xff]
        %v256 = vld [vmem:[%s208 + $0x138] sm:$0xff]
        %v257 = vld [vmem:[%s208 + $0x140] sm:$0xff]
        %v258 = vld [vmem:[%s208 + $0x148] sm:$0xff]
        %v259 = vld [vmem:[%s208 + $0x150] sm:$0xff]
        %v260 = vld [vmem:[%s208 + $0x158] sm:$0xff]
        %v261 = vld [vmem:[%s208 + $0x160] sm:$0xff]
        %v262 = vld [vmem:[%s208 + $0x168] sm:$0xff]
        %v263 = vld [vmem:[%s208 + $0x170] sm:$0xff]
        %v264 = vld [vmem:[%s208 + $0x178] sm:$0xff]
        %v265 = vld [vmem:[%s208 + $0x180] sm:$0xff]
        %v266 = vld [vmem:[%s208 + $0x188] sm:$0xff]
        %v267 = vld [vmem:[%s208 + $0x190] sm:$0xff]
        %v268 = vld [vmem:[%s208 + $0x198] sm:$0xff]
        %v269 = vld [vmem:[%s208 + $0x1a0] sm:$0xff]
        %v270 = vld [vmem:[%s208 + $0x1a8] sm:$0xff]
        %v271 = vld [vmem:[%s208 + $0x1b0] sm:$0xff]
        %v272 = vld [vmem:[%s208 + $0x1b8] sm:$0xff]
        %v273 = vld [vmem:[%s208 + $0x1c0] sm:$0xff]
        %v274 = vld [vmem:[%s208 + $0x1c8] sm:$0xff]
        %v275 = vld [vmem:[%s208 + $0x1d0] sm:$0xff]
        %v276 = vld [vmem:[%s208 + $0x1d8] sm:$0xff]
        %v277 = vld [vmem:[%s208 + $0x1e0] sm:$0xff]
        %v278 = vld [vmem:[%s208 + $0x1e8] sm:$0xff]
        %v279 = vld [vmem:[%s208 + $0x1f0] sm:$0xff]
        %v280 = vld [vmem:[%s208 + $0x1f8] sm:$0xff]
        %v281 = vld [vmem:[#allocation2] sm:$0xff]
        %v282 = vld [vmem:[#allocation2 + $0x8] sm:$0xff]
        %v283 = vld [vmem:[%s2] sm:$0xff]
        %v284 = vld [vmem:[%s2 + $0x8] sm:$0xff]
        %v285 = vld [vmem:[%s2 + $0x10] sm:$0xff]
        %v286 = vld [vmem:[%s2 + $0x18] sm:$0xff]
        %v287 = vld [vmem:[%s2 + $0x20] sm:$0xff]
        %v288 = vld [vmem:[%s2 + $0x28] sm:$0xff]
        %v289 = vld [vmem:[%s2 + $0x30] sm:$0xff]
        %v290 = vld [vmem:[%s2 + $0x38] sm:$0xff]
        %v291 = vld [vmem:[%s2 + $0x40] sm:$0xff]
        %v292 = vld [vmem:[%s2 + $0x48] sm:$0xff]
        %v293 = vld [vmem:[%s2 + $0x50] sm:$0xff]
        %v294 = vld [vmem:[%s2 + $0x58] sm:$0xff]
        %v295 = vld [vmem:[%s2 + $0x60] sm:$0xff]
        %v296 = vld [vmem:[%s2 + $0x68] sm:$0xff]
        %v297 = vld [vmem:[%s2 + $0x70] sm:$0xff]
        %v298 = vld [vmem:[%s2 + $0x78] sm:$0xff]
        %v299 = vld [vmem:[%s2 + $0x80] sm:$0xff]
        %v300 = vld [vmem:[%s2 + $0x88] sm:$0xff]
        %v301 = vld [vmem:[%s2 + $0x90] sm:$0xff]
        %v302 = vld [vmem:[%s2 + $0x98] sm:$0xff]
        %v303 = vld [vmem:[%s2 + $0xa0] sm:$0xff]
        %v304 = vld [vmem:[%s2 + $0xa8] sm:$0xff]
        %v305 = vld [vmem:[%s2 + $0xb0] sm:$0xff]
        %v306 = vld [vmem:[%s2 + $0xb8] sm:$0xff]
        %v307 = vld [vmem:[%s2 + $0xc0] sm:$0xff]
        %v308 = vld [vmem:[%s2 + $0xc8] sm:$0xff]
        %v309 = vld [vmem:[%s2 + $0xd0] sm:$0xff]
        %v310 = vld [vmem:[%s2 + $0xd8] sm:$0xff]
        %v311 = vld [vmem:[%s2 + $0xe0] sm:$0xff]
        %v312 = vld [vmem:[%s2 + $0xe8] sm:$0xff]
        %v313 = vld [vmem:[%s2 + $0xf0] sm:$0xff]
        %v314 = vld [vmem:[%s2 + $0xf8] sm:$0xff]
        %v315 = vld [vmem:[%s2 + $0x100] sm:$0xff]
        %v316 = vld [vmem:[%s2 + $0x108] sm:$0xff]
        %v317 = vld [vmem:[%s2 + $0x110] sm:$0xff]
        %v318 = vld [vmem:[%s2 + $0x118] sm:$0xff]
        %v319 = vld [vmem:[%s2 + $0x120] sm:$0xff]
        %v320 = vld [vmem:[%s2 + $0x128] sm:$0xff]
        %v321 = vld [vmem:[%s2 + $0x130] sm:$0xff]
        %v322 = vld [vmem:[%s2 + $0x138] sm:$0xff]
        %v323 = vld [vmem:[%s2 + $0x140] sm:$0xff]
        %v324 = vld [vmem:[%s2 + $0x148] sm:$0xff]
        %v325 = vld [vmem:[%s2 + $0x150] sm:$0xff]
        %v326 = vld [vmem:[%s2 + $0x158] sm:$0xff]
        %v327 = vld [vmem:[%s2 + $0x160] sm:$0xff]
        %v328 = vld [vmem:[%s2 + $0x168] sm:$0xff]
        %v329 = vld [vmem:[%s2 + $0x170] sm:$0xff]
        %v330 = vld [vmem:[%s2 + $0x178] sm:$0xff]
        %v331 = vld [vmem:[%s2 + $0x180] sm:$0xff]
        %v332 = vld [vmem:[%s2 + $0x188] sm:$0xff]
        %v333 = vld [vmem:[%s2 + $0x190] sm:$0xff]
        %v334 = vld [vmem:[%s2 + $0x198] sm:$0xff]
        %v335 = vld [vmem:[%s2 + $0x1a0] sm:$0xff]
        %v336 = vld [vmem:[%s2 + $0x1a8] sm:$0xff]
        %v337 = vld [vmem:[%s2 + $0x1b0] sm:$0xff]
        %v338 = vld [vmem:[%s2 + $0x1b8] sm:$0xff]
        %v339 = vld [vmem:[%s2 + $0x1c0] sm:$0xff]
        %v340 = vld [vmem:[%s2 + $0x1c8] sm:$0xff]
        %v341 = vld [vmem:[%s2 + $0x1d0] sm:$0xff]
        %v342 = vld [vmem:[%s2 + $0x1d8] sm:$0xff]
        %v343 = vld [vmem:[%s2 + $0x1e0] sm:$0xff]
        %v344 = vld [vmem:[%s2 + $0x1e8] sm:$0xff]
        %v345 = vld [vmem:[%s2 + $0x1f0] sm:$0xff]
        %v346 = vld [vmem:[%s2 + $0x1f8] sm:$0xff]
        %349 = vst [vmem:[#allocation1] ss:$2 sm:$0xff] %v281
        %s350 = scalar_lea.vmem [#allocation1], 16
        %351 = vst [vmem:[%s350] ss:$2 sm:$0xff] %v282
        %v352 = vld.sshfl [vmem:[#allocation1] sm:$0xff pattern:$0x75316420]
        %v353 = vld.sshfl [vmem:[#allocation1 + $0x8] sm:$0xff pattern:$0x75316420]
        %v354 = vld.sshfl [vmem:[#allocation1 + $0x10] sm:$0xff pattern:$0x75316420]
        %v355 = vld.sshfl [vmem:[#allocation1 + $0x18] sm:$0xff pattern:$0x75316420]
        %360 = vmatpush.msra.mxu0 %v232
        %361 = vmatpush.msra.mxu0 %v231
        %362 = vmatpush.msra.mxu0 %v230
        %363 = vmatpush.msra.mxu0 %v229
        %364 = vmatpush.msra.mxu0 %v228
        %365 = vmatpush.msra.mxu0 %v227
        %366 = vmatpush.msra.mxu0 %v226
        %367 = vmatpush.msra.mxu0 %v225
        %368 = vmatpush.msra.mxu0 %v224
        %369 = vmatpush.msra.mxu0 %v223
        %370 = vmatpush.msra.mxu0 %v222
        %371 = vmatpush.msra.mxu0 %v221
        %372 = vmatpush.msra.mxu0 %v220
        %373 = vmatpush.msra.mxu0 %v219
        %374 = vmatpush.msra.mxu0 %v218
        %375 = vmatpush.msra.mxu0 %v217
        %376 = vmatmul.f32.gmra.mxu0 %v352
        %v377 = vpop.f32.mrf.mxu0
        %v378 = vadd.f32 0.0, %v377
        %379 = vdwg.mxu0
        %380 = vmatpush.msra.mxu0 %v248
        %381 = vmatpush.msra.mxu0 %v247
        %382 = vmatpush.msra.mxu0 %v246
        %383 = vmatpush.msra.mxu0 %v245
        %384 = vmatpush.msra.mxu0 %v244
        %385 = vmatpush.msra.mxu0 %v243
        %386 = vmatpush.msra.mxu0 %v242
        %387 = vmatpush.msra.mxu0 %v241
        %388 = vmatpush.msra.mxu0 %v240
        %389 = vmatpush.msra.mxu0 %v239
        %390 = vmatpush.msra.mxu0 %v238
        %391 = vmatpush.msra.mxu0 %v237
        %392 = vmatpush.msra.mxu0 %v236
        %393 = vmatpush.msra.mxu0 %v235
        %394 = vmatpush.msra.mxu0 %v234
        %395 = vmatpush.msra.mxu0 %v233
        %396 = vmatmul.f32.gmra.mxu0 %v353
        %v397 = vpop.f32.mrf.mxu0
        %v398 = vadd.f32 %v378, %v397
        %399 = vdwg.mxu0
        %400 = vmatpush.msra.mxu0 %v264
        %401 = vmatpush.msra.mxu0 %v263
        %402 = vmatpush.msra.mxu0 %v262
        %403 = vmatpush.msra.mxu0 %v261
        %404 = vmatpush.msra.mxu0 %v260
        %405 = vmatpush.msra.mxu0 %v259
        %406 = vmatpush.msra.mxu0 %v258
        %407 = vmatpush.msra.mxu0 %v257
        %408 = vmatpush.msra.mxu0 %v256
        %409 = vmatpush.msra.mxu0 %v255
        %410 = vmatpush.msra.mxu0 %v254
        %411 = vmatpush.msra.mxu0 %v253
        %412 = vmatpush.msra.mxu0 %v252
        %413 = vmatpush.msra.mxu0 %v251
        %414 = vmatpush.msra.mxu0 %v250
        %415 = vmatpush.msra.mxu0 %v249
        %416 = vmatmul.f32.gmra.mxu0 %v354
        %v417 = vpop.f32.mrf.mxu0
        %v418 = vadd.f32 %v398, %v417
        %419 = vdwg.mxu0
        %420 = vmatpush.msra.mxu0 %v280
        %421 = vmatpush.msra.mxu0 %v279
        %422 = vmatpush.msra.mxu0 %v278
        %423 = vmatpush.msra.mxu0 %v277
        %424 = vmatpush.msra.mxu0 %v276
        %425 = vmatpush.msra.mxu0 %v275
        %426 = vmatpush.msra.mxu0 %v274
        %427 = vmatpush.msra.mxu0 %v273
        %428 = vmatpush.msra.mxu0 %v272
        %429 = vmatpush.msra.mxu0 %v271
        %430 = vmatpush.msra.mxu0 %v270
        %431 = vmatpush.msra.mxu0 %v269
        %432 = vmatpush.msra.mxu0 %v268
        %433 = vmatpush.msra.mxu0 %v267
        %434 = vmatpush.msra.mxu0 %v266
        %435 = vmatpush.msra.mxu0 %v265
        %436 = vmatmul.f32.gmra.mxu0 %v355
        %v437 = vpop.f32.mrf.mxu0
        %v438 = vadd.f32 %v418, %v437
        %439 = vdwg.mxu0
        %vm440 = vcmask 388096
        %v441 = vsel %vm440, %v438, -inf
        %v442 = vrot.slane %v441, 4
        %v443 = vmax.f32 %v441, %v442
        %v444 = vrot.slane %v443, 2
        %v445 = vmax.f32 %v443, %v444
        %v446 = vrot.slane %v445, 1
        %v447 = vmax.f32 %v445, %v446
        %v448 = vsub.f32 %v438, %v447
        %v449 = vmul.f32 %v448, 1.442695
        %v450 = vpow.pop %v449
        %v451 = vsel %vm440, %v450, 0.0
        %v452 = vrot.slane %v451, 4
        %v453 = vadd.f32 %v451, %v452
        %v454 = vrot.slane %v453, 2
        %v455 = vadd.f32 %v453, %v454
        %v456 = vrot.slane %v455, 1
        %v457 = vadd.f32 %v455, %v456
        %v458 = vrcp.pop %v457
        %v459 = vmul.f32 %v457, %v458
        %v460 = vsub.f32 1.0, %v459
        %v461 = vmul.f32 %v458, %v460
        %v462 = vadd.f32 %v458, %v461
        %vm463 = vweird.f32 %v457
        %vm464 = vweird.f32 %v458
        %vm465 = vmor %vm463, %vm464
        %v466 = vsel %vm465, %v458, %v462
        %v467 = vand.u32 2147483647, %v457
        %vm468 = vcmp.eq.f32.partialorder %v467, 8.507059e+37
        %v469 = vand.u32 %v457, 2147483648
        %v470 = vor.u32 1.1754944e-38, %v469
        %v471 = vsel %vm468, %v470, %v466
        %v472 = vmul.f32 %v450, %v471
        %vm473 = vcmask 31744
        %v475 = vsel %vm473, %v283, 0
        %v478 = vsel %vm473, %v284, 0
        %v481 = vsel %vm473, %v285, 0
        %v484 = vsel %vm473, %v286, 0
        %v487 = vsel %vm473, %v287, 0
        %v490 = vsel %vm473, %v288, 0
        %v493 = vsel %vm473, %v289, 0
        %v496 = vsel %vm473, %v290, 0
        %v499 = vsel %vm473, %v291, 0
        %v502 = vsel %vm473, %v292, 0
        %v505 = vsel %vm473, %v293, 0
        %v508 = vsel %vm473, %v294, 0
        %v511 = vsel %vm473, %v295, 0
        %v514 = vsel %vm473, %v296, 0
        %v517 = vsel %vm473, %v297, 0
        %v520 = vsel %vm473, %v298, 0
        %v523 = vsel %vm473, %v299, 0
        %v526 = vsel %vm473, %v300, 0
        %v529 = vsel %vm473, %v301, 0
        %v532 = vsel %vm473, %v302, 0
        %v535 = vsel %vm473, %v303, 0
        %v538 = vsel %vm473, %v304, 0
        %v541 = vsel %vm473, %v305, 0
        %v544 = vsel %vm473, %v306, 0
        %v547 = vsel %vm473, %v307, 0
        %v550 = vsel %vm473, %v308, 0
        %v553 = vsel %vm473, %v309, 0
        %v556 = vsel %vm473, %v310, 0
        %v559 = vsel %vm473, %v311, 0
        %v562 = vsel %vm473, %v312, 0
        %v565 = vsel %vm473, %v313, 0
        %v568 = vsel %vm473, %v314, 0
        %v571 = vsel %vm473, %v315, 0
        %v574 = vsel %vm473, %v316, 0
        %v577 = vsel %vm473, %v317, 0
        %v580 = vsel %vm473, %v318, 0
        %v583 = vsel %vm473, %v319, 0
        %v586 = vsel %vm473, %v320, 0
        %v589 = vsel %vm473, %v321, 0
        %v592 = vsel %vm473, %v322, 0
        %v595 = vsel %vm473, %v323, 0
        %v598 = vsel %vm473, %v324, 0
        %v601 = vsel %vm473, %v325, 0
        %v604 = vsel %vm473, %v326, 0
        %v607 = vsel %vm473, %v327, 0
        %v610 = vsel %vm473, %v328, 0
        %v613 = vsel %vm473, %v329, 0
        %v616 = vsel %vm473, %v330, 0
        %v619 = vsel %vm473, %v331, 0
        %v622 = vsel %vm473, %v332, 0
        %v625 = vsel %vm473, %v333, 0
        %v628 = vsel %vm473, %v334, 0
        %v631 = vsel %vm473, %v335, 0
        %v634 = vsel %vm473, %v336, 0
        %v637 = vsel %vm473, %v337, 0
        %v640 = vsel %vm473, %v338, 0
        %v643 = vsel %vm473, %v339, 0
        %v646 = vsel %vm473, %v340, 0
        %v649 = vsel %vm473, %v341, 0
        %v652 = vsel %vm473, %v342, 0
        %v655 = vsel %vm473, %v343, 0
        %v658 = vsel %vm473, %v344, 0
        %v661 = vsel %vm473, %v345, 0
        %v664 = vsel %vm473, %v346, 0
        %vm666 = vcmask 1043456
        %v668 = vsel %vm666, %v472, 0
        %670 = vmatpush.msra.mxu0 0.0
        %671 = vmatpush.msra.mxu0 0.0
        %672 = vmatpush.msra.mxu0 0.0
        %673 = vmatpush.msra.mxu0 0.0
        %674 = vmatpush.msra.mxu0 0.0
        %675 = vmatpush.msra.mxu0 0.0
        %676 = vmatpush.msra.mxu0 0.0
        %677 = vmatpush.msra.mxu0 0.0
        %678 = vmatpush.msra.mxu0 0.0
        %679 = vmatpush.msra.mxu0 0.0
        %680 = vmatpush.msra.mxu0 0.0
        %681 = vmatpush.msra.mxu0 0.0
        %682 = vmatpush.msra.mxu0 0.0
        %683 = vmatpush.msra.mxu0 0.0
        %684 = vmatpush.msra.mxu0 0.0
        %685 = vmatpush.msra.mxu0 %v668
        %686 = vmatmul.f32.gmra.mxu0 %v475
        %v687 = vpop.f32.mrf.mxu0
        %v688 = vadd.f32 0.0, %v687
        %689 = vmatmul.f32.gmra.mxu0 %v478
        %v690 = vpop.f32.mrf.mxu0
        %v691 = vadd.f32 0.0, %v690
        %692 = vmatmul.f32.gmra.mxu0 %v481
        %v693 = vpop.f32.mrf.mxu0
        %v694 = vadd.f32 0.0, %v693
        %695 = vmatmul.f32.gmra.mxu0 %v484
        %v696 = vpop.f32.mrf.mxu0
        %v697 = vadd.f32 0.0, %v696
        %698 = vmatmul.f32.gmra.mxu0 %v487
        %v699 = vpop.f32.mrf.mxu0
        %v700 = vadd.f32 0.0, %v699
        %701 = vmatmul.f32.gmra.mxu0 %v490
        %v702 = vpop.f32.mrf.mxu0
        %v703 = vadd.f32 0.0, %v702
        %704 = vmatmul.f32.gmra.mxu0 %v493
        %v705 = vpop.f32.mrf.mxu0
        %v706 = vadd.f32 0.0, %v705
        %707 = vmatmul.f32.gmra.mxu0 %v496
        %v708 = vpop.f32.mrf.mxu0
        %v709 = vadd.f32 0.0, %v708
        %710 = vmatmul.f32.gmra.mxu0 %v499
        %v711 = vpop.f32.mrf.mxu0
        %v712 = vadd.f32 0.0, %v711
        %713 = vmatmul.f32.gmra.mxu0 %v502
        %v714 = vpop.f32.mrf.mxu0
        %v715 = vadd.f32 0.0, %v714
        %716 = vmatmul.f32.gmra.mxu0 %v505
        %v717 = vpop.f32.mrf.mxu0
        %v718 = vadd.f32 0.0, %v717
        %719 = vmatmul.f32.gmra.mxu0 %v508
        %v720 = vpop.f32.mrf.mxu0
        %v721 = vadd.f32 0.0, %v720
        %722 = vmatmul.f32.gmra.mxu0 %v511
        %v723 = vpop.f32.mrf.mxu0
        %v724 = vadd.f32 0.0, %v723
        %725 = vmatmul.f32.gmra.mxu0 %v514
        %v726 = vpop.f32.mrf.mxu0
        %v727 = vadd.f32 0.0, %v726
        %728 = vmatmul.f32.gmra.mxu0 %v517
        %v729 = vpop.f32.mrf.mxu0
        %v730 = vadd.f32 0.0, %v729
        %731 = vmatmul.f32.gmra.mxu0 %v520
        %v732 = vpop.f32.mrf.mxu0
        %v733 = vadd.f32 0.0, %v732
        %734 = vmatmul.f32.gmra.mxu0 %v523
        %v735 = vpop.f32.mrf.mxu0
        %v736 = vadd.f32 0.0, %v735
        %737 = vmatmul.f32.gmra.mxu0 %v526
        %v738 = vpop.f32.mrf.mxu0
        %v739 = vadd.f32 0.0, %v738
        %740 = vmatmul.f32.gmra.mxu0 %v529
        %v741 = vpop.f32.mrf.mxu0
        %v742 = vadd.f32 0.0, %v741
        %743 = vmatmul.f32.gmra.mxu0 %v532
        %v744 = vpop.f32.mrf.mxu0
        %v745 = vadd.f32 0.0, %v744
        %746 = vmatmul.f32.gmra.mxu0 %v535
        %v747 = vpop.f32.mrf.mxu0
        %v748 = vadd.f32 0.0, %v747
        %749 = vmatmul.f32.gmra.mxu0 %v538
        %v750 = vpop.f32.mrf.mxu0
        %v751 = vadd.f32 0.0, %v750
        %752 = vmatmul.f32.gmra.mxu0 %v541
        %v753 = vpop.f32.mrf.mxu0
        %v754 = vadd.f32 0.0, %v753
        %755 = vmatmul.f32.gmra.mxu0 %v544
        %v756 = vpop.f32.mrf.mxu0
        %v757 = vadd.f32 0.0, %v756
        %758 = vmatmul.f32.gmra.mxu0 %v547
        %v759 = vpop.f32.mrf.mxu0
        %v760 = vadd.f32 0.0, %v759
        %761 = vmatmul.f32.gmra.mxu0 %v550
        %v762 = vpop.f32.mrf.mxu0
        %v763 = vadd.f32 0.0, %v762
        %764 = vmatmul.f32.gmra.mxu0 %v553
        %v765 = vpop.f32.mrf.mxu0
        %v766 = vadd.f32 0.0, %v765
        %767 = vmatmul.f32.gmra.mxu0 %v556
        %v768 = vpop.f32.mrf.mxu0
        %v769 = vadd.f32 0.0, %v768
        %770 = vmatmul.f32.gmra.mxu0 %v559
        %v771 = vpop.f32.mrf.mxu0
        %v772 = vadd.f32 0.0, %v771
        %773 = vmatmul.f32.gmra.mxu0 %v562
        %v774 = vpop.f32.mrf.mxu0
        %v775 = vadd.f32 0.0, %v774
        %776 = vmatmul.f32.gmra.mxu0 %v565
        %v777 = vpop.f32.mrf.mxu0
        %v778 = vadd.f32 0.0, %v777
        %779 = vmatmul.f32.gmra.mxu0 %v568
        %v780 = vpop.f32.mrf.mxu0
        %v781 = vadd.f32 0.0, %v780
        %782 = vmatmul.f32.gmra.mxu0 %v571
        %v783 = vpop.f32.mrf.mxu0
        %v784 = vadd.f32 0.0, %v783
        %785 = vmatmul.f32.gmra.mxu0 %v574
        %v786 = vpop.f32.mrf.mxu0
        %v787 = vadd.f32 0.0, %v786
        %788 = vmatmul.f32.gmra.mxu0 %v577
        %v789 = vpop.f32.mrf.mxu0
        %v790 = vadd.f32 0.0, %v789
        %791 = vmatmul.f32.gmra.mxu0 %v580
        %v792 = vpop.f32.mrf.mxu0
        %v793 = vadd.f32 0.0, %v792
        %794 = vmatmul.f32.gmra.mxu0 %v583
        %v795 = vpop.f32.mrf.mxu0
        %v796 = vadd.f32 0.0, %v795
        %797 = vmatmul.f32.gmra.mxu0 %v586
        %v798 = vpop.f32.mrf.mxu0
        %v799 = vadd.f32 0.0, %v798
        %800 = vmatmul.f32.gmra.mxu0 %v589
        %v801 = vpop.f32.mrf.mxu0
        %v802 = vadd.f32 0.0, %v801
        %803 = vmatmul.f32.gmra.mxu0 %v592
        %v804 = vpop.f32.mrf.mxu0
        %v805 = vadd.f32 0.0, %v804
        %806 = vmatmul.f32.gmra.mxu0 %v595
        %v807 = vpop.f32.mrf.mxu0
        %v808 = vadd.f32 0.0, %v807
        %809 = vmatmul.f32.gmra.mxu0 %v598
        %v810 = vpop.f32.mrf.mxu0
        %v811 = vadd.f32 0.0, %v810
        %812 = vmatmul.f32.gmra.mxu0 %v601
        %v813 = vpop.f32.mrf.mxu0
        %v814 = vadd.f32 0.0, %v813
        %815 = vmatmul.f32.gmra.mxu0 %v604
        %v816 = vpop.f32.mrf.mxu0
        %v817 = vadd.f32 0.0, %v816
        %818 = vmatmul.f32.gmra.mxu0 %v607
        %v819 = vpop.f32.mrf.mxu0
        %v820 = vadd.f32 0.0, %v819
        %821 = vmatmul.f32.gmra.mxu0 %v610
        %v822 = vpop.f32.mrf.mxu0
        %v823 = vadd.f32 0.0, %v822
        %824 = vmatmul.f32.gmra.mxu0 %v613
        %v825 = vpop.f32.mrf.mxu0
        %v826 = vadd.f32 0.0, %v825
        %827 = vmatmul.f32.gmra.mxu0 %v616
        %v828 = vpop.f32.mrf.mxu0
        %v829 = vadd.f32 0.0, %v828
        %830 = vmatmul.f32.gmra.mxu0 %v619
        %v831 = vpop.f32.mrf.mxu0
        %v832 = vadd.f32 0.0, %v831
        %833 = vmatmul.f32.gmra.mxu0 %v622
        %v834 = vpop.f32.mrf.mxu0
        %v835 = vadd.f32 0.0, %v834
        %836 = vmatmul.f32.gmra.mxu0 %v625
        %v837 = vpop.f32.mrf.mxu0
        %v838 = vadd.f32 0.0, %v837
        %839 = vmatmul.f32.gmra.mxu0 %v628
        %v840 = vpop.f32.mrf.mxu0
        %v841 = vadd.f32 0.0, %v840
        %842 = vmatmul.f32.gmra.mxu0 %v631
        %v843 = vpop.f32.mrf.mxu0
        %v844 = vadd.f32 0.0, %v843
        %845 = vmatmul.f32.gmra.mxu0 %v634
        %v846 = vpop.f32.mrf.mxu0
        %v847 = vadd.f32 0.0, %v846
        %848 = vmatmul.f32.gmra.mxu0 %v637
        %v849 = vpop.f32.mrf.mxu0
        %v850 = vadd.f32 0.0, %v849
        %851 = vmatmul.f32.gmra.mxu0 %v640
        %v852 = vpop.f32.mrf.mxu0
        %v853 = vadd.f32 0.0, %v852
        %854 = vmatmul.f32.gmra.mxu0 %v643
        %v855 = vpop.f32.mrf.mxu0
        %v856 = vadd.f32 0.0, %v855
        %857 = vmatmul.f32.gmra.mxu0 %v646
        %v858 = vpop.f32.mrf.mxu0
        %v859 = vadd.f32 0.0, %v858
        %860 = vmatmul.f32.gmra.mxu0 %v649
        %v861 = vpop.f32.mrf.mxu0
        %v862 = vadd.f32 0.0, %v861
        %863 = vmatmul.f32.gmra.mxu0 %v652
        %v864 = vpop.f32.mrf.mxu0
        %v865 = vadd.f32 0.0, %v864
        %866 = vmatmul.f32.gmra.mxu0 %v655
        %v867 = vpop.f32.mrf.mxu0
        %v868 = vadd.f32 0.0, %v867
        %869 = vmatmul.f32.gmra.mxu0 %v658
        %v870 = vpop.f32.mrf.mxu0
        %v871 = vadd.f32 0.0, %v870
        %872 = vmatmul.f32.gmra.mxu0 %v661
        %v873 = vpop.f32.mrf.mxu0
        %v874 = vadd.f32 0.0, %v873
        %875 = vmatmul.f32.gmra.mxu0 %v664
        %v876 = vpop.f32.mrf.mxu0
        %v877 = vadd.f32 0.0, %v876
        %878 = vdwg.mxu0
        %vm879 = vcmask 392192
        %880 = vst.msk [vmem:[%s216] sm:$0xff] %vm879, %v688
        %881 = vst.msk [vmem:[%s216 + $0x8] sm:$0xff] %vm879, %v691
        %882 = vst.msk [vmem:[%s216 + $0x10] sm:$0xff] %vm879, %v694
        %883 = vst.msk [vmem:[%s216 + $0x18] sm:$0xff] %vm879, %v697
        %884 = vst.msk [vmem:[%s216 + $0x20] sm:$0xff] %vm879, %v700
        %885 = vst.msk [vmem:[%s216 + $0x28] sm:$0xff] %vm879, %v703
        %886 = vst.msk [vmem:[%s216 + $0x30] sm:$0xff] %vm879, %v706
        %887 = vst.msk [vmem:[%s216 + $0x38] sm:$0xff] %vm879, %v709
        %888 = vst.msk [vmem:[%s216 + $0x40] sm:$0xff] %vm879, %v712
        %889 = vst.msk [vmem:[%s216 + $0x48] sm:$0xff] %vm879, %v715
        %890 = vst.msk [vmem:[%s216 + $0x50] sm:$0xff] %vm879, %v718
        %891 = vst.msk [vmem:[%s216 + $0x58] sm:$0xff] %vm879, %v721
        %892 = vst.msk [vmem:[%s216 + $0x60] sm:$0xff] %vm879, %v724
        %893 = vst.msk [vmem:[%s216 + $0x68] sm:$0xff] %vm879, %v727
        %894 = vst.msk [vmem:[%s216 + $0x70] sm:$0xff] %vm879, %v730
        %895 = vst.msk [vmem:[%s216 + $0x78] sm:$0xff] %vm879, %v733
        %896 = vst.msk [vmem:[%s216 + $0x80] sm:$0xff] %vm879, %v736
        %897 = vst.msk [vmem:[%s216 + $0x88] sm:$0xff] %vm879, %v739
        %898 = vst.msk [vmem:[%s216 + $0x90] sm:$0xff] %vm879, %v742
        %899 = vst.msk [vmem:[%s216 + $0x98] sm:$0xff] %vm879, %v745
        %900 = vst.msk [vmem:[%s216 + $0xa0] sm:$0xff] %vm879, %v748
        %901 = vst.msk [vmem:[%s216 + $0xa8] sm:$0xff] %vm879, %v751
        %902 = vst.msk [vmem:[%s216 + $0xb0] sm:$0xff] %vm879, %v754
        %903 = vst.msk [vmem:[%s216 + $0xb8] sm:$0xff] %vm879, %v757
        %904 = vst.msk [vmem:[%s216 + $0xc0] sm:$0xff] %vm879, %v760
        %905 = vst.msk [vmem:[%s216 + $0xc8] sm:$0xff] %vm879, %v763
        %906 = vst.msk [vmem:[%s216 + $0xd0] sm:$0xff] %vm879, %v766
        %907 = vst.msk [vmem:[%s216 + $0xd8] sm:$0xff] %vm879, %v769
        %908 = vst.msk [vmem:[%s216 + $0xe0] sm:$0xff] %vm879, %v772
        %909 = vst.msk [vmem:[%s216 + $0xe8] sm:$0xff] %vm879, %v775
        %910 = vst.msk [vmem:[%s216 + $0xf0] sm:$0xff] %vm879, %v778
        %911 = vst.msk [vmem:[%s216 + $0xf8] sm:$0xff] %vm879, %v781
        %912 = vst.msk [vmem:[%s216 + $0x100] sm:$0xff] %vm879, %v784
        %913 = vst.msk [vmem:[%s216 + $0x108] sm:$0xff] %vm879, %v787
        %914 = vst.msk [vmem:[%s216 + $0x110] sm:$0xff] %vm879, %v790
        %915 = vst.msk [vmem:[%s216 + $0x118] sm:$0xff] %vm879, %v793
        %916 = vst.msk [vmem:[%s216 + $0x120] sm:$0xff] %vm879, %v796
        %917 = vst.msk [vmem:[%s216 + $0x128] sm:$0xff] %vm879, %v799
        %918 = vst.msk [vmem:[%s216 + $0x130] sm:$0xff] %vm879, %v802
        %919 = vst.msk [vmem:[%s216 + $0x138] sm:$0xff] %vm879, %v805
        %920 = vst.msk [vmem:[%s216 + $0x140] sm:$0xff] %vm879, %v808
        %921 = vst.msk [vmem:[%s216 + $0x148] sm:$0xff] %vm879, %v811
        %922 = vst.msk [vmem:[%s216 + $0x150] sm:$0xff] %vm879, %v814
        %923 = vst.msk [vmem:[%s216 + $0x158] sm:$0xff] %vm879, %v817
        %924 = vst.msk [vmem:[%s216 + $0x160] sm:$0xff] %vm879, %v820
        %925 = vst.msk [vmem:[%s216 + $0x168] sm:$0xff] %vm879, %v823
        %926 = vst.msk [vmem:[%s216 + $0x170] sm:$0xff] %vm879, %v826
        %927 = vst.msk [vmem:[%s216 + $0x178] sm:$0xff] %vm879, %v829
        %928 = vst.msk [vmem:[%s216 + $0x180] sm:$0xff] %vm879, %v832
        %929 = vst.msk [vmem:[%s216 + $0x188] sm:$0xff] %vm879, %v835
        %930 = vst.msk [vmem:[%s216 + $0x190] sm:$0xff] %vm879, %v838
        %931 = vst.msk [vmem:[%s216 + $0x198] sm:$0xff] %vm879, %v841
        %932 = vst.msk [vmem:[%s216 + $0x1a0] sm:$0xff] %vm879, %v844
        %933 = vst.msk [vmem:[%s216 + $0x1a8] sm:$0xff] %vm879, %v847
        %934 = vst.msk [vmem:[%s216 + $0x1b0] sm:$0xff] %vm879, %v850
        %935 = vst.msk [vmem:[%s216 + $0x1b8] sm:$0xff] %vm879, %v853
        %936 = vst.msk [vmem:[%s216 + $0x1c0] sm:$0xff] %vm879, %v856
        %937 = vst.msk [vmem:[%s216 + $0x1c8] sm:$0xff] %vm879, %v859
        %938 = vst.msk [vmem:[%s216 + $0x1d0] sm:$0xff] %vm879, %v862
        %939 = vst.msk [vmem:[%s216 + $0x1d8] sm:$0xff] %vm879, %v865
        %940 = vst.msk [vmem:[%s216 + $0x1e0] sm:$0xff] %vm879, %v868
        %941 = vst.msk [vmem:[%s216 + $0x1e8] sm:$0xff] %vm879, %v871
        %942 = vst.msk [vmem:[%s216 + $0x1f0] sm:$0xff] %vm879, %v874
        %943 = vst.msk [vmem:[%s216 + $0x1f8] sm:$0xff] %vm879, %v877
        %p944 = scmp.lt.s32.totalorder %s19, 1
        %s945 = scalar_select %p944, %s19, 1
        %p946 = scmp.lt.s32.totalorder %s20, 0
        %s947 = scalar_select %p946, %s20, 0
        %s948 = smul.addr %s945, 64
        %s949 = sadd.s32 %s947, %s948
        %s950 = smul.addr %s949, 8
        %s951 = scalar_lea.vmem %s3, %s950
        // Predicated region
        $region37: #{isa_block.2} parent=31 // pred_check
          %p952 = pneg %p117
        $region38: #{isa_block.2} parent=31 // pred_check_branch
          %954 = sbr.rel (%p952) target = $region40
        $region39: #{isa_block.2} parent=31 // pred_region
          _
        $region40: #{isa_block.2} parent=31 // pred_fallthru
          _
      $region32: #{isa_block.2} parent=5 // pred_fallthru
        _
      %p955 = scmp.le.s32.totalorder 2, %s10
      // Predicated region
      $region41: #{isa_block.2} parent=5 // pred_check
        %p956 = pneg %p955
      $region42: #{isa_block.2} parent=5 // pred_check_branch
        %958 = sbr.rel (%p956) target = $region44
      $region43: #{isa_block.2} parent=5 // pred_region
        %s959 = ssub.s32 %s10, 2
        // Predicated region
        $region45: #{isa_block.2} parent=43 // pred_check
          %p960 = pneg %p123
        $region46: #{isa_block.2} parent=43 // pred_check_branch
          %962 = sbr.rel (%p960) target = $region48
        $region47: #{isa_block.2} parent=43 // pred_region
          %p963 = scmp.lt.s32.totalorder %s21, 1
          %s964 = scalar_select %p963, %s21, 1
          %p965 = scmp.lt.s32.totalorder %s22, 0
          %s966 = scalar_select %p965, %s22, 0
          %s967 = smul.addr %s964, 64
          %s968 = sadd.s32 %s966, %s967
          %s969 = smul.addr %s968, 8
          %s970 = scalar_lea.vmem %s3, %s969
        $region48: #{isa_block.2} parent=43 // pred_fallthru
          _
      $region44: #{isa_block.2} parent=5 // pred_fallthru
        _
    $region6: #{isa_block.2} parent=1 // loop_footer
      %s14 = sadd.s32 1, %s10
    $region7: #{isa_block.2} parent=1 // loop_footer_branch
      %9 = sbr.rel target = $region3
    $region8: #{isa_block.2} parent=1 // loop_exit
      _
    %971 = vsyncpa [#allocation3], 1
    %s972 = scalar_lea.sflag [#allocation3], 1
    %973 = vsyncpa %s972, 1

// kernel: isa_block.3
$region0: #{isa_block.3}
  #allocation0 [shape = 'u32[]', space=smem, size = 0x4, offset = 0x4, fixed_abs, tag = 'smem constant byte address 0x4 - core index']
  #allocation1 [shape = 'u32[72,128]{1,0:T(1,128)}', space=vmem, size = 0x9000, scoped, tag = 'internal scratch']
  %s0 = inlined_call_operand.vmem [shape: f32[8,512,12], index: 0, kind: input, shape index: {}]
  %s1 = inlined_call_operand.vmem [shape: f32[4,512], index: 1, kind: input, shape index: {}]
  %s2 = inlined_call_operand.vmem [shape: f32[512,4], index: 2, kind: input, shape index: {}]
  %s3 = inlined_call_operand.vmem [shape: f32[8,512,12], index: 3, kind: output, shape index: {}]
  %s4 = sld [smem:[#allocation0]]
  $region45: #{isa_block.3} parent=0
    _
  %s6 = ssub.s32 1, %s4
  %s7 = scalar_select 0, %s6, %s4
  loop: start=0, step=1, limit=10
  $region2: #{isa_block.3} parent=0 // loop_pre_header
    _
  $region3: #{isa_block.3} parent=0 // loop_header
    %s9 = sphi 0, %s13
    %p10 = scmp.ge.s32.totalorder %s9, 10
    %s16 = sphi 0, %s28
    %s17 = sphi 0, %s24
    %s18 = sphi 0, %s16
    %s19 = sphi 0, %s17
    %s20 = sphi 0, %s18
    %s21 = sphi 0, %s19
    %s33 = sphi 0, %s35
    %s36 = sphi 0, %s33
    %s37 = sphi 0, %s36
    %s53 = sphi 0, %s37
    %s57 = sphi 0, %s57
    %s59 = sphi 0, %s57
    %s60 = sphi 0, %s59
    %s74 = sphi 0, %s60
    %s78 = sphi 0, %s78
    %s80 = sphi 0, %s78
    %s81 = sphi 0, %s80
    %s95 = sphi 0, %s81
    %s103 = sphi 0, %s105
    %s106 = sphi 0, %s103
    %s107 = sphi 0, %s106
    %s123 = sphi 0, %s107
  $region4: #{isa_block.3} parent=0 // loop_header_branch
    %12 = sbr.rel (%p10) target = $region8
  $region5: #{isa_block.3} parent=0 // loop_body
    %s14 = ssub.s32 %s9, 1
    %s15 = ssub.s32 %s9, 2
    %s22 = sadd.s32 1, %s17
    %p23 = scmp.ge.s32.totalorder %s22, 1
    %s24 = scalar_select %p23, 0, %s22
    %s25 = sadd.s32 1, %s16
    %s26 = scalar_select %p23, %s25, %s16
    %p27 = scmp.ge.s32.totalorder %s26, 8
    %s28 = scalar_select %p27, 0, %s26
    %s29 = ssub.s32 %s16, %s28
    %s30 = ssub.s32 %s17, %s24
    %s31 = sor.u32 %s29, %s30
    %p32 = scmp.eq.s32.totalorder %s31, 0
    %s34 = sadd.s32 %s33, 1
    %s35 = scalar_select %p32, %s33, %s34
    %p38 = pneg %p32
    %p39 = scmp.eq.s32.totalorder %s9, 7
    %p40 = por %p38, %p39
    %p41 = scmp.ne.s32.totalorder %s33, %s36
    %p42 = scmp.eq.s32.totalorder %s9, 0
    %p43 = por %p41, %p42
    %p44 = scmp.ne.s32.totalorder %s33, %s36
    %p45 = scmp.eq.s32.totalorder %s14, 7
    %p46 = por %p44, %p45
    %p47 = scmp.ne.s32.totalorder %s36, %s37
    %p48 = scmp.eq.s32.totalorder %s14, 0
    %p49 = por %p47, %p48
    %p50 = scmp.ne.s32.totalorder %s36, %s37
    %p51 = scmp.eq.s32.totalorder %s15, 7
    %p52 = por %p50, %p51
    %p54 = scmp.ne.s32.totalorder %s37, %s53
    %p55 = scmp.eq.s32.totalorder %s15, 0
    %p56 = por %p54, %p55
    %s58 = sadd.s32 %s57, 1
    %p61 = scmp.eq.s32.totalorder %s9, 7
    %p62 = scmp.ne.s32.totalorder %s57, %s59
    %p63 = scmp.eq.s32.totalorder %s9, 0
    %p64 = por %p62, %p63
    %p65 = scmp.ne.s32.totalorder %s57, %s59
    %p66 = scmp.eq.s32.totalorder %s14, 7
    %p67 = por %p65, %p66
    %p68 = scmp.ne.s32.totalorder %s59, %s60
    %p69 = scmp.eq.s32.totalorder %s14, 0
    %p70 = por %p68, %p69
    %p71 = scmp.ne.s32.totalorder %s59, %s60
    %p72 = scmp.eq.s32.totalorder %s15, 7
    %p73 = por %p71, %p72
    %p75 = scmp.ne.s32.totalorder %s60, %s74
    %p76 = scmp.eq.s32.totalorder %s15, 0
    %p77 = por %p75, %p76
    %s79 = sadd.s32 %s78, 1
    %p82 = scmp.eq.s32.totalorder %s9, 7
    %p83 = scmp.ne.s32.totalorder %s78, %s80
    %p84 = scmp.eq.s32.totalorder %s9, 0
    %p85 = por %p83, %p84
    %p86 = scmp.ne.s32.totalorder %s78, %s80
    %p87 = scmp.eq.s32.totalorder %s14, 7
    %p88 = por %p86, %p87
    %p89 = scmp.ne.s32.totalorder %s80, %s81
    %p90 = scmp.eq.s32.totalorder %s14, 0
    %p91 = por %p89, %p90
    %p92 = scmp.ne.s32.totalorder %s80, %s81
    %p93 = scmp.eq.s32.totalorder %s15, 7
    %p94 = por %p92, %p93
    %p96 = scmp.ne.s32.totalorder %s81, %s95
    %p97 = scmp.eq.s32.totalorder %s15, 0
    %p98 = por %p96, %p97
    %s99 = ssub.s32 %s16, %s28
    %s100 = ssub.s32 %s17, %s24
    %s101 = sor.u32 %s99, %s100
    %p102 = scmp.eq.s32.totalorder %s101, 0
    %s104 = sadd.s32 %s103, 1
    %s105 = scalar_select %p102, %s103, %s104
    %p108 = pneg %p102
    %p109 = scmp.eq.s32.totalorder %s9, 7
    %p110 = por %p108, %p109
    %p111 = scmp.ne.s32.totalorder %s103, %s106
    %p112 = scmp.eq.s32.totalorder %s9, 0
    %p113 = por %p111, %p112
    %p114 = scmp.ne.s32.totalorder %s103, %s106
    %p115 = scmp.eq.s32.totalorder %s14, 7
    %p116 = por %p114, %p115
    %p117 = scmp.ne.s32.totalorder %s106, %s107
    %p118 = scmp.eq.s32.totalorder %s14, 0
    %p119 = por %p117, %p118
    %p120 = scmp.ne.s32.totalorder %s106, %s107
    %p121 = scmp.eq.s32.totalorder %s15, 7
    %p122 = por %p120, %p121
    %p124 = scmp.ne.s32.totalorder %s107, %s123
    %p125 = scmp.eq.s32.totalorder %s15, 0
    %p126 = por %p124, %p125
    %p127 = scmp.le.s32.totalorder 1, %s9
    %p128 = scmp.lt.s32.totalorder %s9, 9
    %p129 = pnand %p127, %p128
    %p130 = pneg %p129
    // Predicated region
    $region9: #{isa_block.3} parent=5 // pred_check
      _
    $region10: #{isa_block.3} parent=5 // pred_check_branch
      %132 = sbr.rel (%p129) target = $region12
    $region11: #{isa_block.3} parent=5 // pred_region
      %s133 = ssub.s32 %s9, 1
      // Predicated region
      $region13: #{isa_block.3} parent=11 // pred_check
        %p134 = pneg %p70
      $region14: #{isa_block.3} parent=11 // pred_check_branch
        %136 = sbr.rel (%p134) target = $region16
      $region15: #{isa_block.3} parent=11 // pred_region
        _
      $region16: #{isa_block.3} parent=11 // pred_fallthru
        _
      // Predicated region
      $region17: #{isa_block.3} parent=11 // pred_check
        %p137 = pneg %p91
      $region18: #{isa_block.3} parent=11 // pred_check_branch
        %139 = sbr.rel (%p137) target = $region20
      $region19: #{isa_block.3} parent=11 // pred_region
        _
      $region20: #{isa_block.3} parent=11 // pred_fallthru
        _
    $region12: #{isa_block.3} parent=5 // pred_fallthru
      _
    %p140 = scmp.lt.s32.totalorder %s9, 8
    // Predicated region
    $region21: #{isa_block.3} parent=5 // pred_check
      %p141 = pneg %p140
    $region22: #{isa_block.3} parent=5 // pred_check_branch
      %143 = sbr.rel (%p141) target = $region24
    $region23: #{isa_block.3} parent=5 // pred_region
      // Predicated region
      $region25: #{isa_block.3} parent=23 // pred_check
        %p144 = pneg %p43
      $region26: #{isa_block.3} parent=23 // pred_check_branch
        %146 = sbr.rel (%p144) target = $region28
      $region27: #{isa_block.3} parent=23 // pred_region
        %p147 = scmp.lt.s32.totalorder %s16, 7
        %s148 = scalar_select %p147, %s16, 7
        %p149 = scmp.lt.s32.totalorder %s17, 0
        %s150 = scalar_select %p149, %s17, 0
        %s151 = smul.addr %s148, 64
        %s152 = sadd.s32 %s150, %s151
        %s153 = smul.addr %s152, 8
        %s154 = scalar_lea.vmem %s0, %s153
      $region28: #{isa_block.3} parent=23 // pred_fallthru
        _
    $region24: #{isa_block.3} parent=5 // pred_fallthru
      _
    %p155 = scmp.le.s32.totalorder 1, %s9
    %p156 = scmp.lt.s32.totalorder %s9, 9
    %p157 = pnand %p155, %p156
    %p158 = pneg %p157
    // Predicated region
    $region29: #{isa_block.3} parent=5 // pred_check
      _
    $region30: #{isa_block.3} parent=5 // pred_check_branch
      %160 = sbr.rel (%p157) target = $region32
    $region31: #{isa_block.3} parent=5 // pred_region
      %s161 = ssub.s32 %s9, 1
      %p162 = scmp.lt.s32.totalorder %s18, 7
      %s163 = scalar_select %p162, %s18, 7
      %p164 = scmp.lt.s32.totalorder %s19, 0
      %s165 = scalar_select %p164, %s19, 0
      %s166 = smul.addr %s163, 64
      %s167 = sadd.s32 %s165, %s166
      %s168 = smul.addr %s167, 8
      %s169 = scalar_lea.vmem %s0, %s168
      %p170 = pneg %p49
      %p171 = pneg %p46
      %p172 = pneg %p70
      %p173 = pneg %p67
      %p174 = pneg %p91
      %p175 = pneg %p88
      %p176 = pneg %p119
      %p177 = pneg %p116
      %p178 = scmp.lt.s32.totalorder %s18, 7
      %s179 = scalar_select %p178, %s18, 7
      %p180 = scmp.lt.s32.totalorder %s19, 0
      %s181 = scalar_select %p180, %s19, 0
      %s182 = smul.addr %s179, 64
      %s183 = sadd.s32 %s181, %s182
      %s184 = smul.addr %s183, 8
      %s185 = scalar_lea.vmem %s3, %s184
      %p186 = scmp.lt.s32.totalorder %s18, 7
      %s187 = scalar_select %p186, %s18, 7
      %p188 = scmp.lt.s32.totalorder %s19, 0
      %s189 = scalar_select %p188, %s19, 0
      %s190 = smul.addr %s187, 64
      %s191 = sadd.s32 %s189, %s190
      %s192 = smul.addr %s191, 8
      %s193 = scalar_lea.vmem %s0, %s192
      %p194 = scmp.lt.s32.totalorder %s18, 7
      %s195 = scalar_select %p194, %s18, 7
      %p196 = scmp.lt.s32.totalorder %s19, 0
      %s197 = scalar_select %p196, %s19, 0
      %s198 = smul.addr %s195, 64
      %s199 = sadd.s32 %s197, %s198
      %s200 = smul.addr %s199, 8
      %s201 = scalar_lea.vmem %s3, %s200
      %v202 = vld [vmem:[%s193] sm:$0xff]
      %v203 = vld [vmem:[%s193 + $0x8] sm:$0xff]
      %v204 = vld [vmem:[%s193 + $0x10] sm:$0xff]
      %v205 = vld [vmem:[%s193 + $0x18] sm:$0xff]
      %v206 = vld [vmem:[%s193 + $0x20] sm:$0xff]
      %v207 = vld [vmem:[%s193 + $0x28] sm:$0xff]
      %v208 = vld [vmem:[%s193 + $0x30] sm:$0xff]
      %v209 = vld [vmem:[%s193 + $0x38] sm:$0xff]
      %v210 = vld [vmem:[%s193 + $0x40] sm:$0xff]
      %v211 = vld [vmem:[%s193 + $0x48] sm:$0xff]
      %v212 = vld [vmem:[%s193 + $0x50] sm:$0xff]
      %v213 = vld [vmem:[%s193 + $0x58] sm:$0xff]
      %v214 = vld [vmem:[%s193 + $0x60] sm:$0xff]
      %v215 = vld [vmem:[%s193 + $0x68] sm:$0xff]
      %v216 = vld [vmem:[%s193 + $0x70] sm:$0xff]
      %v217 = vld [vmem:[%s193 + $0x78] sm:$0xff]
      %v218 = vld [vmem:[%s193 + $0x80] sm:$0xff]
      %v219 = vld [vmem:[%s193 + $0x88] sm:$0xff]
      %v220 = vld [vmem:[%s193 + $0x90] sm:$0xff]
      %v221 = vld [vmem:[%s193 + $0x98] sm:$0xff]
      %v222 = vld [vmem:[%s193 + $0xa0] sm:$0xff]
      %v223 = vld [vmem:[%s193 + $0xa8] sm:$0xff]
      %v224 = vld [vmem:[%s193 + $0xb0] sm:$0xff]
      %v225 = vld [vmem:[%s193 + $0xb8] sm:$0xff]
      %v226 = vld [vmem:[%s193 + $0xc0] sm:$0xff]
      %v227 = vld [vmem:[%s193 + $0xc8] sm:$0xff]
      %v228 = vld [vmem:[%s193 + $0xd0] sm:$0xff]
      %v229 = vld [vmem:[%s193 + $0xd8] sm:$0xff]
      %v230 = vld [vmem:[%s193 + $0xe0] sm:$0xff]
      %v231 = vld [vmem:[%s193 + $0xe8] sm:$0xff]
      %v232 = vld [vmem:[%s193 + $0xf0] sm:$0xff]
      %v233 = vld [vmem:[%s193 + $0xf8] sm:$0xff]
      %v234 = vld [vmem:[%s193 + $0x100] sm:$0xff]
      %v235 = vld [vmem:[%s193 + $0x108] sm:$0xff]
      %v236 = vld [vmem:[%s193 + $0x110] sm:$0xff]
      %v237 = vld [vmem:[%s193 + $0x118] sm:$0xff]
      %v238 = vld [vmem:[%s193 + $0x120] sm:$0xff]
      %v239 = vld [vmem:[%s193 + $0x128] sm:$0xff]
      %v240 = vld [vmem:[%s193 + $0x130] sm:$0xff]
      %v241 = vld [vmem:[%s193 + $0x138] sm:$0xff]
      %v242 = vld [vmem:[%s193 + $0x140] sm:$0xff]
      %v243 = vld [vmem:[%s193 + $0x148] sm:$0xff]
      %v244 = vld [vmem:[%s193 + $0x150] sm:$0xff]
      %v245 = vld [vmem:[%s193 + $0x158] sm:$0xff]
      %v246 = vld [vmem:[%s193 + $0x160] sm:$0xff]
      %v247 = vld [vmem:[%s193 + $0x168] sm:$0xff]
      %v248 = vld [vmem:[%s193 + $0x170] sm:$0xff]
      %v249 = vld [vmem:[%s193 + $0x178] sm:$0xff]
      %v250 = vld [vmem:[%s193 + $0x180] sm:$0xff]
      %v251 = vld [vmem:[%s193 + $0x188] sm:$0xff]
      %v252 = vld [vmem:[%s193 + $0x190] sm:$0xff]
      %v253 = vld [vmem:[%s193 + $0x198] sm:$0xff]
      %v254 = vld [vmem:[%s193 + $0x1a0] sm:$0xff]
      %v255 = vld [vmem:[%s193 + $0x1a8] sm:$0xff]
      %v256 = vld [vmem:[%s193 + $0x1b0] sm:$0xff]
      %v257 = vld [vmem:[%s193 + $0x1b8] sm:$0xff]
      %v258 = vld [vmem:[%s193 + $0x1c0] sm:$0xff]
      %v259 = vld [vmem:[%s193 + $0x1c8] sm:$0xff]
      %v260 = vld [vmem:[%s193 + $0x1d0] sm:$0xff]
      %v261 = vld [vmem:[%s193 + $0x1d8] sm:$0xff]
      %v262 = vld [vmem:[%s193 + $0x1e0] sm:$0xff]
      %v263 = vld [vmem:[%s193 + $0x1e8] sm:$0xff]
      %v264 = vld [vmem:[%s193 + $0x1f0] sm:$0xff]
      %v265 = vld [vmem:[%s193 + $0x1f8] sm:$0xff]
      %v266 = vld [vmem:[%s1] sm:$0xff]
      %v267 = vld [vmem:[%s1 + $0x8] sm:$0xff]
      %v268 = vld [vmem:[%s2] sm:$0xff]
      %v269 = vld [vmem:[%s2 + $0x8] sm:$0xff]
      %v270 = vld [vmem:[%s2 + $0x10] sm:$0xff]
      %v271 = vld [vmem:[%s2 + $0x18] sm:$0xff]
      %v272 = vld [vmem:[%s2 + $0x20] sm:$0xff]
      %v273 = vld [vmem:[%s2 + $0x28] sm:$0xff]
      %v274 = vld [vmem:[%s2 + $0x30] sm:$0xff]
      %v275 = vld [vmem:[%s2 + $0x38] sm:$0xff]
      %v276 = vld [vmem:[%s2 + $0x40] sm:$0xff]
      %v277 = vld [vmem:[%s2 + $0x48] sm:$0xff]
      %v278 = vld [vmem:[%s2 + $0x50] sm:$0xff]
      %v279 = vld [vmem:[%s2 + $0x58] sm:$0xff]
      %v280 = vld [vmem:[%s2 + $0x60] sm:$0xff]
      %v281 = vld [vmem:[%s2 + $0x68] sm:$0xff]
      %v282 = vld [vmem:[%s2 + $0x70] sm:$0xff]
      %v283 = vld [vmem:[%s2 + $0x78] sm:$0xff]
      %v284 = vld [vmem:[%s2 + $0x80] sm:$0xff]
      %v285 = vld [vmem:[%s2 + $0x88] sm:$0xff]
      %v286 = vld [vmem:[%s2 + $0x90] sm:$0xff]
      %v287 = vld [vmem:[%s2 + $0x98] sm:$0xff]
      %v288 = vld [vmem:[%s2 + $0xa0] sm:$0xff]
      %v289 = vld [vmem:[%s2 + $0xa8] sm:$0xff]
      %v290 = vld [vmem:[%s2 + $0xb0] sm:$0xff]
      %v291 = vld [vmem:[%s2 + $0xb8] sm:$0xff]
      %v292 = vld [vmem:[%s2 + $0xc0] sm:$0xff]
      %v293 = vld [vmem:[%s2 + $0xc8] sm:$0xff]
      %v294 = vld [vmem:[%s2 + $0xd0] sm:$0xff]
      %v295 = vld [vmem:[%s2 + $0xd8] sm:$0xff]
      %v296 = vld [vmem:[%s2 + $0xe0] sm:$0xff]
      %v297 = vld [vmem:[%s2 + $0xe8] sm:$0xff]
      %v298 = vld [vmem:[%s2 + $0xf0] sm:$0xff]
      %v299 = vld [vmem:[%s2 + $0xf8] sm:$0xff]
      %v300 = vld [vmem:[%s2 + $0x100] sm:$0xff]
      %v301 = vld [vmem:[%s2 + $0x108] sm:$0xff]
      %v302 = vld [vmem:[%s2 + $0x110] sm:$0xff]
      %v303 = vld [vmem:[%s2 + $0x118] sm:$0xff]
      %v304 = vld [vmem:[%s2 + $0x120] sm:$0xff]
      %v305 = vld [vmem:[%s2 + $0x128] sm:$0xff]
      %v306 = vld [vmem:[%s2 + $0x130] sm:$0xff]
      %v307 = vld [vmem:[%s2 + $0x138] sm:$0xff]
      %v308 = vld [vmem:[%s2 + $0x140] sm:$0xff]
      %v309 = vld [vmem:[%s2 + $0x148] sm:$0xff]
      %v310 = vld [vmem:[%s2 + $0x150] sm:$0xff]
      %v311 = vld [vmem:[%s2 + $0x158] sm:$0xff]
      %v312 = vld [vmem:[%s2 + $0x160] sm:$0xff]
      %v313 = vld [vmem:[%s2 + $0x168] sm:$0xff]
      %v314 = vld [vmem:[%s2 + $0x170] sm:$0xff]
      %v315 = vld [vmem:[%s2 + $0x178] sm:$0xff]
      %v316 = vld [vmem:[%s2 + $0x180] sm:$0xff]
      %v317 = vld [vmem:[%s2 + $0x188] sm:$0xff]
      %v318 = vld [vmem:[%s2 + $0x190] sm:$0xff]
      %v319 = vld [vmem:[%s2 + $0x198] sm:$0xff]
      %v320 = vld [vmem:[%s2 + $0x1a0] sm:$0xff]
      %v321 = vld [vmem:[%s2 + $0x1a8] sm:$0xff]
      %v322 = vld [vmem:[%s2 + $0x1b0] sm:$0xff]
      %v323 = vld [vmem:[%s2 + $0x1b8] sm:$0xff]
      %v324 = vld [vmem:[%s2 + $0x1c0] sm:$0xff]
      %v325 = vld [vmem:[%s2 + $0x1c8] sm:$0xff]
      %v326 = vld [vmem:[%s2 + $0x1d0] sm:$0xff]
      %v327 = vld [vmem:[%s2 + $0x1d8] sm:$0xff]
      %v328 = vld [vmem:[%s2 + $0x1e0] sm:$0xff]
      %v329 = vld [vmem:[%s2 + $0x1e8] sm:$0xff]
      %v330 = vld [vmem:[%s2 + $0x1f0] sm:$0xff]
      %v331 = vld [vmem:[%s2 + $0x1f8] sm:$0xff]
      %334 = vst [vmem:[#allocation1] ss:$2 sm:$0xff] %v266
      %s335 = scalar_lea.vmem [#allocation1], 16
      %336 = vst [vmem:[%s335] ss:$2 sm:$0xff] %v267
      %v337 = vld.sshfl [vmem:[#allocation1] sm:$0xff pattern:$0x75316420]
      %v338 = vld.sshfl [vmem:[#allocation1 + $0x8] sm:$0xff pattern:$0x75316420]
      %v339 = vld.sshfl [vmem:[#allocation1 + $0x10] sm:$0xff pattern:$0x75316420]
      %v340 = vld.sshfl [vmem:[#allocation1 + $0x18] sm:$0xff pattern:$0x75316420]
      %345 = vmatpush.msra.mxu0 %v217
      %346 = vmatpush.msra.mxu0 %v216
      %347 = vmatpush.msra.mxu0 %v215
      %348 = vmatpush.msra.mxu0 %v214
      %349 = vmatpush.msra.mxu0 %v213
      %350 = vmatpush.msra.mxu0 %v212
      %351 = vmatpush.msra.mxu0 %v211
      %352 = vmatpush.msra.mxu0 %v210
      %353 = vmatpush.msra.mxu0 %v209
      %354 = vmatpush.msra.mxu0 %v208
      %355 = vmatpush.msra.mxu0 %v207
      %356 = vmatpush.msra.mxu0 %v206
      %357 = vmatpush.msra.mxu0 %v205
      %358 = vmatpush.msra.mxu0 %v204
      %359 = vmatpush.msra.mxu0 %v203
      %360 = vmatpush.msra.mxu0 %v202
      %361 = vmatmul.f32.gmra.mxu0 %v337
      %v362 = vpop.f32.mrf.mxu0
      %v363 = vadd.f32 0.0, %v362
      %364 = vdwg.mxu0
      %365 = vmatpush.msra.mxu0 %v233
      %366 = vmatpush.msra.mxu0 %v232
      %367 = vmatpush.msra.mxu0 %v231
      %368 = vmatpush.msra.mxu0 %v230
      %369 = vmatpush.msra.mxu0 %v229
      %370 = vmatpush.msra.mxu0 %v228
      %371 = vmatpush.msra.mxu0 %v227
      %372 = vmatpush.msra.mxu0 %v226
      %373 = vmatpush.msra.mxu0 %v225
      %374 = vmatpush.msra.mxu0 %v224
      %375 = vmatpush.msra.mxu0 %v223
      %376 = vmatpush.msra.mxu0 %v222
      %377 = vmatpush.msra.mxu0 %v221
      %378 = vmatpush.msra.mxu0 %v220
      %379 = vmatpush.msra.mxu0 %v219
      %380 = vmatpush.msra.mxu0 %v218
      %381 = vmatmul.f32.gmra.mxu0 %v338
      %v382 = vpop.f32.mrf.mxu0
      %v383 = vadd.f32 %v363, %v382
      %384 = vdwg.mxu0
      %385 = vmatpush.msra.mxu0 %v249
      %386 = vmatpush.msra.mxu0 %v248
      %387 = vmatpush.msra.mxu0 %v247
      %388 = vmatpush.msra.mxu0 %v246
      %389 = vmatpush.msra.mxu0 %v245
      %390 = vmatpush.msra.mxu0 %v244
      %391 = vmatpush.msra.mxu0 %v243
      %392 = vmatpush.msra.mxu0 %v242
      %393 = vmatpush.msra.mxu0 %v241
      %394 = vmatpush.msra.mxu0 %v240
      %395 = vmatpush.msra.mxu0 %v239
      %396 = vmatpush.msra.mxu0 %v238
      %397 = vmatpush.msra.mxu0 %v237
      %398 = vmatpush.msra.mxu0 %v236
      %399 = vmatpush.msra.mxu0 %v235
      %400 = vmatpush.msra.mxu0 %v234
      %401 = vmatmul.f32.gmra.mxu0 %v339
      %v402 = vpop.f32.mrf.mxu0
      %v403 = vadd.f32 %v383, %v402
      %404 = vdwg.mxu0
      %405 = vmatpush.msra.mxu0 %v265
      %406 = vmatpush.msra.mxu0 %v264
      %407 = vmatpush.msra.mxu0 %v263
      %408 = vmatpush.msra.mxu0 %v262
      %409 = vmatpush.msra.mxu0 %v261
      %410 = vmatpush.msra.mxu0 %v260
      %411 = vmatpush.msra.mxu0 %v259
      %412 = vmatpush.msra.mxu0 %v258
      %413 = vmatpush.msra.mxu0 %v257
      %414 = vmatpush.msra.mxu0 %v256
      %415 = vmatpush.msra.mxu0 %v255
      %416 = vmatpush.msra.mxu0 %v254
      %417 = vmatpush.msra.mxu0 %v253
      %418 = vmatpush.msra.mxu0 %v252
      %419 = vmatpush.msra.mxu0 %v251
      %420 = vmatpush.msra.mxu0 %v250
      %421 = vmatmul.f32.gmra.mxu0 %v340
      %v422 = vpop.f32.mrf.mxu0
      %v423 = vadd.f32 %v403, %v422
      %424 = vdwg.mxu0
      %vm425 = vcmask 93184
      %v426 = vsel %vm425, %v423, -inf
      %v427 = vrot.slane %v426, 4
      %v428 = vmax.f32 %v426, %v427
      %v429 = vrot.slane %v428, 2
      %v430 = vmax.f32 %v428, %v429
      %v431 = vrot.slane %v430, 1
      %v432 = vmax.f32 %v430, %v431
      %v433 = vsub.f32 %v423, %v432
      %v434 = vmul.f32 %v433, 1.442695
      %v435 = vpow.pop %v434
      %v436 = vsel %vm425, %v435, 0.0
      %v437 = vrot.slane %v436, 4
      %v438 = vadd.f32 %v436, %v437
      %v439 = vrot.slane %v438, 2
      %v440 = vadd.f32 %v438, %v439
      %v441 = vrot.slane %v440, 1
      %v442 = vadd.f32 %v440, %v441
      %v443 = vrcp.pop %v442
      %v444 = vmul.f32 %v442, %v443
      %v445 = vsub.f32 1.0, %v444
      %v446 = vmul.f32 %v443, %v445
      %v447 = vadd.f32 %v443, %v446
      %vm448 = vweird.f32 %v442
      %vm449 = vweird.f32 %v443
      %vm450 = vmor %vm448, %vm449
      %v451 = vsel %vm450, %v443, %v447
      %v452 = vand.u32 2147483647, %v442
      %vm453 = vcmp.eq.f32.partialorder %v452, 8.507059e+37
      %v454 = vand.u32 %v442, 2147483648
      %v455 = vor.u32 1.1754944e-38, %v454
      %v456 = vsel %vm453, %v455, %v451
      %v457 = vmul.f32 %v435, %v456
      %vm458 = vcmask 31744
      %v460 = vsel %vm458, %v268, 0
      %v463 = vsel %vm458, %v269, 0
      %v466 = vsel %vm458, %v270, 0
      %v469 = vsel %vm458, %v271, 0
      %v472 = vsel %vm458, %v272, 0
      %v475 = vsel %vm458, %v273, 0
      %v478 = vsel %vm458, %v274, 0
      %v481 = vsel %vm458, %v275, 0
      %v484 = vsel %vm458, %v276, 0
      %v487 = vsel %vm458, %v277, 0
      %v490 = vsel %vm458, %v278, 0
      %v493 = vsel %vm458, %v279, 0
      %v496 = vsel %vm458, %v280, 0
      %v499 = vsel %vm458, %v281, 0
      %v502 = vsel %vm458, %v282, 0
      %v505 = vsel %vm458, %v283, 0
      %v508 = vsel %vm458, %v284, 0
      %v511 = vsel %vm458, %v285, 0
      %v514 = vsel %vm458, %v286, 0
      %v517 = vsel %vm458, %v287, 0
      %v520 = vsel %vm458, %v288, 0
      %v523 = vsel %vm458, %v289, 0
      %v526 = vsel %vm458, %v290, 0
      %v529 = vsel %vm458, %v291, 0
      %v532 = vsel %vm458, %v292, 0
      %v535 = vsel %vm458, %v293, 0
      %v538 = vsel %vm458, %v294, 0
      %v541 = vsel %vm458, %v295, 0
      %v544 = vsel %vm458, %v296, 0
      %v547 = vsel %vm458, %v297, 0
      %v550 = vsel %vm458, %v298, 0
      %v553 = vsel %vm458, %v299, 0
      %v556 = vsel %vm458, %v300, 0
      %v559 = vsel %vm458, %v301, 0
      %v562 = vsel %vm458, %v302, 0
      %v565 = vsel %vm458, %v303, 0
      %v568 = vsel %vm458, %v304, 0
      %v571 = vsel %vm458, %v305, 0
      %v574 = vsel %vm458, %v306, 0
      %v577 = vsel %vm458, %v307, 0
      %v580 = vsel %vm458, %v308, 0
      %v583 = vsel %vm458, %v309, 0
      %v586 = vsel %vm458, %v310, 0
      %v589 = vsel %vm458, %v311, 0
      %v592 = vsel %vm458, %v312, 0
      %v595 = vsel %vm458, %v313, 0
      %v598 = vsel %vm458, %v314, 0
      %v601 = vsel %vm458, %v315, 0
      %v604 = vsel %vm458, %v316, 0
      %v607 = vsel %vm458, %v317, 0
      %v610 = vsel %vm458, %v318, 0
      %v613 = vsel %vm458, %v319, 0
      %v616 = vsel %vm458, %v320, 0
      %v619 = vsel %vm458, %v321, 0
      %v622 = vsel %vm458, %v322, 0
      %v625 = vsel %vm458, %v323, 0
      %v628 = vsel %vm458, %v324, 0
      %v631 = vsel %vm458, %v325, 0
      %v634 = vsel %vm458, %v326, 0
      %v637 = vsel %vm458, %v327, 0
      %v640 = vsel %vm458, %v328, 0
      %v643 = vsel %vm458, %v329, 0
      %v646 = vsel %vm458, %v330, 0
      %v649 = vsel %vm458, %v331, 0
      %vm651 = vcmask 1043456
      %v653 = vsel %vm651, %v457, 0
      %655 = vmatpush.msra.mxu0 0.0
      %656 = vmatpush.msra.mxu0 0.0
      %657 = vmatpush.msra.mxu0 0.0
      %658 = vmatpush.msra.mxu0 0.0
      %659 = vmatpush.msra.mxu0 0.0
      %660 = vmatpush.msra.mxu0 0.0
      %661 = vmatpush.msra.mxu0 0.0
      %662 = vmatpush.msra.mxu0 0.0
      %663 = vmatpush.msra.mxu0 0.0
      %664 = vmatpush.msra.mxu0 0.0
      %665 = vmatpush.msra.mxu0 0.0
      %666 = vmatpush.msra.mxu0 0.0
      %667 = vmatpush.msra.mxu0 0.0
      %668 = vmatpush.msra.mxu0 0.0
      %669 = vmatpush.msra.mxu0 0.0
      %670 = vmatpush.msra.mxu0 %v653
      %671 = vmatmul.f32.gmra.mxu0 %v460
      %v672 = vpop.f32.mrf.mxu0
      %v673 = vadd.f32 0.0, %v672
      %674 = vmatmul.f32.gmra.mxu0 %v463
      %v675 = vpop.f32.mrf.mxu0
      %v676 = vadd.f32 0.0, %v675
      %677 = vmatmul.f32.gmra.mxu0 %v466
      %v678 = vpop.f32.mrf.mxu0
      %v679 = vadd.f32 0.0, %v678
      %680 = vmatmul.f32.gmra.mxu0 %v469
      %v681 = vpop.f32.mrf.mxu0
      %v682 = vadd.f32 0.0, %v681
      %683 = vmatmul.f32.gmra.mxu0 %v472
      %v684 = vpop.f32.mrf.mxu0
      %v685 = vadd.f32 0.0, %v684
      %686 = vmatmul.f32.gmra.mxu0 %v475
      %v687 = vpop.f32.mrf.mxu0
      %v688 = vadd.f32 0.0, %v687
      %689 = vmatmul.f32.gmra.mxu0 %v478
      %v690 = vpop.f32.mrf.mxu0
      %v691 = vadd.f32 0.0, %v690
      %692 = vmatmul.f32.gmra.mxu0 %v481
      %v693 = vpop.f32.mrf.mxu0
      %v694 = vadd.f32 0.0, %v693
      %695 = vmatmul.f32.gmra.mxu0 %v484
      %v696 = vpop.f32.mrf.mxu0
      %v697 = vadd.f32 0.0, %v696
      %698 = vmatmul.f32.gmra.mxu0 %v487
      %v699 = vpop.f32.mrf.mxu0
      %v700 = vadd.f32 0.0, %v699
      %701 = vmatmul.f32.gmra.mxu0 %v490
      %v702 = vpop.f32.mrf.mxu0
      %v703 = vadd.f32 0.0, %v702
      %704 = vmatmul.f32.gmra.mxu0 %v493
      %v705 = vpop.f32.mrf.mxu0
      %v706 = vadd.f32 0.0, %v705
      %707 = vmatmul.f32.gmra.mxu0 %v496
      %v708 = vpop.f32.mrf.mxu0
      %v709 = vadd.f32 0.0, %v708
      %710 = vmatmul.f32.gmra.mxu0 %v499
      %v711 = vpop.f32.mrf.mxu0
      %v712 = vadd.f32 0.0, %v711
      %713 = vmatmul.f32.gmra.mxu0 %v502
      %v714 = vpop.f32.mrf.mxu0
      %v715 = vadd.f32 0.0, %v714
      %716 = vmatmul.f32.gmra.mxu0 %v505
      %v717 = vpop.f32.mrf.mxu0
      %v718 = vadd.f32 0.0, %v717
      %719 = vmatmul.f32.gmra.mxu0 %v508
      %v720 = vpop.f32.mrf.mxu0
      %v721 = vadd.f32 0.0, %v720
      %722 = vmatmul.f32.gmra.mxu0 %v511
      %v723 = vpop.f32.mrf.mxu0
      %v724 = vadd.f32 0.0, %v723
      %725 = vmatmul.f32.gmra.mxu0 %v514
      %v726 = vpop.f32.mrf.mxu0
      %v727 = vadd.f32 0.0, %v726
      %728 = vmatmul.f32.gmra.mxu0 %v517
      %v729 = vpop.f32.mrf.mxu0
      %v730 = vadd.f32 0.0, %v729
      %731 = vmatmul.f32.gmra.mxu0 %v520
      %v732 = vpop.f32.mrf.mxu0
      %v733 = vadd.f32 0.0, %v732
      %734 = vmatmul.f32.gmra.mxu0 %v523
      %v735 = vpop.f32.mrf.mxu0
      %v736 = vadd.f32 0.0, %v735
      %737 = vmatmul.f32.gmra.mxu0 %v526
      %v738 = vpop.f32.mrf.mxu0
      %v739 = vadd.f32 0.0, %v738
      %740 = vmatmul.f32.gmra.mxu0 %v529
      %v741 = vpop.f32.mrf.mxu0
      %v742 = vadd.f32 0.0, %v741
      %743 = vmatmul.f32.gmra.mxu0 %v532
      %v744 = vpop.f32.mrf.mxu0
      %v745 = vadd.f32 0.0, %v744
      %746 = vmatmul.f32.gmra.mxu0 %v535
      %v747 = vpop.f32.mrf.mxu0
      %v748 = vadd.f32 0.0, %v747
      %749 = vmatmul.f32.gmra.mxu0 %v538
      %v750 = vpop.f32.mrf.mxu0
      %v751 = vadd.f32 0.0, %v750
      %752 = vmatmul.f32.gmra.mxu0 %v541
      %v753 = vpop.f32.mrf.mxu0
      %v754 = vadd.f32 0.0, %v753
      %755 = vmatmul.f32.gmra.mxu0 %v544
      %v756 = vpop.f32.mrf.mxu0
      %v757 = vadd.f32 0.0, %v756
      %758 = vmatmul.f32.gmra.mxu0 %v547
      %v759 = vpop.f32.mrf.mxu0
      %v760 = vadd.f32 0.0, %v759
      %761 = vmatmul.f32.gmra.mxu0 %v550
      %v762 = vpop.f32.mrf.mxu0
      %v763 = vadd.f32 0.0, %v762
      %764 = vmatmul.f32.gmra.mxu0 %v553
      %v765 = vpop.f32.mrf.mxu0
      %v766 = vadd.f32 0.0, %v765
      %767 = vmatmul.f32.gmra.mxu0 %v556
      %v768 = vpop.f32.mrf.mxu0
      %v769 = vadd.f32 0.0, %v768
      %770 = vmatmul.f32.gmra.mxu0 %v559
      %v771 = vpop.f32.mrf.mxu0
      %v772 = vadd.f32 0.0, %v771
      %773 = vmatmul.f32.gmra.mxu0 %v562
      %v774 = vpop.f32.mrf.mxu0
      %v775 = vadd.f32 0.0, %v774
      %776 = vmatmul.f32.gmra.mxu0 %v565
      %v777 = vpop.f32.mrf.mxu0
      %v778 = vadd.f32 0.0, %v777
      %779 = vmatmul.f32.gmra.mxu0 %v568
      %v780 = vpop.f32.mrf.mxu0
      %v781 = vadd.f32 0.0, %v780
      %782 = vmatmul.f32.gmra.mxu0 %v571
      %v783 = vpop.f32.mrf.mxu0
      %v784 = vadd.f32 0.0, %v783
      %785 = vmatmul.f32.gmra.mxu0 %v574
      %v786 = vpop.f32.mrf.mxu0
      %v787 = vadd.f32 0.0, %v786
      %788 = vmatmul.f32.gmra.mxu0 %v577
      %v789 = vpop.f32.mrf.mxu0
      %v790 = vadd.f32 0.0, %v789
      %791 = vmatmul.f32.gmra.mxu0 %v580
      %v792 = vpop.f32.mrf.mxu0
      %v793 = vadd.f32 0.0, %v792
      %794 = vmatmul.f32.gmra.mxu0 %v583
      %v795 = vpop.f32.mrf.mxu0
      %v796 = vadd.f32 0.0, %v795
      %797 = vmatmul.f32.gmra.mxu0 %v586
      %v798 = vpop.f32.mrf.mxu0
      %v799 = vadd.f32 0.0, %v798
      %800 = vmatmul.f32.gmra.mxu0 %v589
      %v801 = vpop.f32.mrf.mxu0
      %v802 = vadd.f32 0.0, %v801
      %803 = vmatmul.f32.gmra.mxu0 %v592
      %v804 = vpop.f32.mrf.mxu0
      %v805 = vadd.f32 0.0, %v804
      %806 = vmatmul.f32.gmra.mxu0 %v595
      %v807 = vpop.f32.mrf.mxu0
      %v808 = vadd.f32 0.0, %v807
      %809 = vmatmul.f32.gmra.mxu0 %v598
      %v810 = vpop.f32.mrf.mxu0
      %v811 = vadd.f32 0.0, %v810
      %812 = vmatmul.f32.gmra.mxu0 %v601
      %v813 = vpop.f32.mrf.mxu0
      %v814 = vadd.f32 0.0, %v813
      %815 = vmatmul.f32.gmra.mxu0 %v604
      %v816 = vpop.f32.mrf.mxu0
      %v817 = vadd.f32 0.0, %v816
      %818 = vmatmul.f32.gmra.mxu0 %v607
      %v819 = vpop.f32.mrf.mxu0
      %v820 = vadd.f32 0.0, %v819
      %821 = vmatmul.f32.gmra.mxu0 %v610
      %v822 = vpop.f32.mrf.mxu0
      %v823 = vadd.f32 0.0, %v822
      %824 = vmatmul.f32.gmra.mxu0 %v613
      %v825 = vpop.f32.mrf.mxu0
      %v826 = vadd.f32 0.0, %v825
      %827 = vmatmul.f32.gmra.mxu0 %v616
      %v828 = vpop.f32.mrf.mxu0
      %v829 = vadd.f32 0.0, %v828
      %830 = vmatmul.f32.gmra.mxu0 %v619
      %v831 = vpop.f32.mrf.mxu0
      %v832 = vadd.f32 0.0, %v831
      %833 = vmatmul.f32.gmra.mxu0 %v622
      %v834 = vpop.f32.mrf.mxu0
      %v835 = vadd.f32 0.0, %v834
      %836 = vmatmul.f32.gmra.mxu0 %v625
      %v837 = vpop.f32.mrf.mxu0
      %v838 = vadd.f32 0.0, %v837
      %839 = vmatmul.f32.gmra.mxu0 %v628
      %v840 = vpop.f32.mrf.mxu0
      %v841 = vadd.f32 0.0, %v840
      %842 = vmatmul.f32.gmra.mxu0 %v631
      %v843 = vpop.f32.mrf.mxu0
      %v844 = vadd.f32 0.0, %v843
      %845 = vmatmul.f32.gmra.mxu0 %v634
      %v846 = vpop.f32.mrf.mxu0
      %v847 = vadd.f32 0.0, %v846
      %848 = vmatmul.f32.gmra.mxu0 %v637
      %v849 = vpop.f32.mrf.mxu0
      %v850 = vadd.f32 0.0, %v849
      %851 = vmatmul.f32.gmra.mxu0 %v640
      %v852 = vpop.f32.mrf.mxu0
      %v853 = vadd.f32 0.0, %v852
      %854 = vmatmul.f32.gmra.mxu0 %v643
      %v855 = vpop.f32.mrf.mxu0
      %v856 = vadd.f32 0.0, %v855
      %857 = vmatmul.f32.gmra.mxu0 %v646
      %v858 = vpop.f32.mrf.mxu0
      %v859 = vadd.f32 0.0, %v858
      %860 = vmatmul.f32.gmra.mxu0 %v649
      %v861 = vpop.f32.mrf.mxu0
      %v862 = vadd.f32 0.0, %v861
      %863 = vdwg.mxu0
      %vm864 = vcmask 97280
      %865 = vst.msk [vmem:[%s201] sm:$0xff] %vm864, %v673
      %866 = vst.msk [vmem:[%s201 + $0x8] sm:$0xff] %vm864, %v676
      %867 = vst.msk [vmem:[%s201 + $0x10] sm:$0xff] %vm864, %v679
      %868 = vst.msk [vmem:[%s201 + $0x18] sm:$0xff] %vm864, %v682
      %869 = vst.msk [vmem:[%s201 + $0x20] sm:$0xff] %vm864, %v685
      %870 = vst.msk [vmem:[%s201 + $0x28] sm:$0xff] %vm864, %v688
      %871 = vst.msk [vmem:[%s201 + $0x30] sm:$0xff] %vm864, %v691
      %872 = vst.msk [vmem:[%s201 + $0x38] sm:$0xff] %vm864, %v694
      %873 = vst.msk [vmem:[%s201 + $0x40] sm:$0xff] %vm864, %v697
      %874 = vst.msk [vmem:[%s201 + $0x48] sm:$0xff] %vm864, %v700
      %875 = vst.msk [vmem:[%s201 + $0x50] sm:$0xff] %vm864, %v703
      %876 = vst.msk [vmem:[%s201 + $0x58] sm:$0xff] %vm864, %v706
      %877 = vst.msk [vmem:[%s201 + $0x60] sm:$0xff] %vm864, %v709
      %878 = vst.msk [vmem:[%s201 + $0x68] sm:$0xff] %vm864, %v712
      %879 = vst.msk [vmem:[%s201 + $0x70] sm:$0xff] %vm864, %v715
      %880 = vst.msk [vmem:[%s201 + $0x78] sm:$0xff] %vm864, %v718
      %881 = vst.msk [vmem:[%s201 + $0x80] sm:$0xff] %vm864, %v721
      %882 = vst.msk [vmem:[%s201 + $0x88] sm:$0xff] %vm864, %v724
      %883 = vst.msk [vmem:[%s201 + $0x90] sm:$0xff] %vm864, %v727
      %884 = vst.msk [vmem:[%s201 + $0x98] sm:$0xff] %vm864, %v730
      %885 = vst.msk [vmem:[%s201 + $0xa0] sm:$0xff] %vm864, %v733
      %886 = vst.msk [vmem:[%s201 + $0xa8] sm:$0xff] %vm864, %v736
      %887 = vst.msk [vmem:[%s201 + $0xb0] sm:$0xff] %vm864, %v739
      %888 = vst.msk [vmem:[%s201 + $0xb8] sm:$0xff] %vm864, %v742
      %889 = vst.msk [vmem:[%s201 + $0xc0] sm:$0xff] %vm864, %v745
      %890 = vst.msk [vmem:[%s201 + $0xc8] sm:$0xff] %vm864, %v748
      %891 = vst.msk [vmem:[%s201 + $0xd0] sm:$0xff] %vm864, %v751
      %892 = vst.msk [vmem:[%s201 + $0xd8] sm:$0xff] %vm864, %v754
      %893 = vst.msk [vmem:[%s201 + $0xe0] sm:$0xff] %vm864, %v757
      %894 = vst.msk [vmem:[%s201 + $0xe8] sm:$0xff] %vm864, %v760
      %895 = vst.msk [vmem:[%s201 + $0xf0] sm:$0xff] %vm864, %v763
      %896 = vst.msk [vmem:[%s201 + $0xf8] sm:$0xff] %vm864, %v766
      %897 = vst.msk [vmem:[%s201 + $0x100] sm:$0xff] %vm864, %v769
      %898 = vst.msk [vmem:[%s201 + $0x108] sm:$0xff] %vm864, %v772
      %899 = vst.msk [vmem:[%s201 + $0x110] sm:$0xff] %vm864, %v775
      %900 = vst.msk [vmem:[%s201 + $0x118] sm:$0xff] %vm864, %v778
      %901 = vst.msk [vmem:[%s201 + $0x120] sm:$0xff] %vm864, %v781
      %902 = vst.msk [vmem:[%s201 + $0x128] sm:$0xff] %vm864, %v784
      %903 = vst.msk [vmem:[%s201 + $0x130] sm:$0xff] %vm864, %v787
      %904 = vst.msk [vmem:[%s201 + $0x138] sm:$0xff] %vm864, %v790
      %905 = vst.msk [vmem:[%s201 + $0x140] sm:$0xff] %vm864, %v793
      %906 = vst.msk [vmem:[%s201 + $0x148] sm:$0xff] %vm864, %v796
      %907 = vst.msk [vmem:[%s201 + $0x150] sm:$0xff] %vm864, %v799
      %908 = vst.msk [vmem:[%s201 + $0x158] sm:$0xff] %vm864, %v802
      %909 = vst.msk [vmem:[%s201 + $0x160] sm:$0xff] %vm864, %v805
      %910 = vst.msk [vmem:[%s201 + $0x168] sm:$0xff] %vm864, %v808
      %911 = vst.msk [vmem:[%s201 + $0x170] sm:$0xff] %vm864, %v811
      %912 = vst.msk [vmem:[%s201 + $0x178] sm:$0xff] %vm864, %v814
      %913 = vst.msk [vmem:[%s201 + $0x180] sm:$0xff] %vm864, %v817
      %914 = vst.msk [vmem:[%s201 + $0x188] sm:$0xff] %vm864, %v820
      %915 = vst.msk [vmem:[%s201 + $0x190] sm:$0xff] %vm864, %v823
      %916 = vst.msk [vmem:[%s201 + $0x198] sm:$0xff] %vm864, %v826
      %917 = vst.msk [vmem:[%s201 + $0x1a0] sm:$0xff] %vm864, %v829
      %918 = vst.msk [vmem:[%s201 + $0x1a8] sm:$0xff] %vm864, %v832
      %919 = vst.msk [vmem:[%s201 + $0x1b0] sm:$0xff] %vm864, %v835
      %920 = vst.msk [vmem:[%s201 + $0x1b8] sm:$0xff] %vm864, %v838
      %921 = vst.msk [vmem:[%s201 + $0x1c0] sm:$0xff] %vm864, %v841
      %922 = vst.msk [vmem:[%s201 + $0x1c8] sm:$0xff] %vm864, %v844
      %923 = vst.msk [vmem:[%s201 + $0x1d0] sm:$0xff] %vm864, %v847
      %924 = vst.msk [vmem:[%s201 + $0x1d8] sm:$0xff] %vm864, %v850
      %925 = vst.msk [vmem:[%s201 + $0x1e0] sm:$0xff] %vm864, %v853
      %926 = vst.msk [vmem:[%s201 + $0x1e8] sm:$0xff] %vm864, %v856
      %927 = vst.msk [vmem:[%s201 + $0x1f0] sm:$0xff] %vm864, %v859
      %928 = vst.msk [vmem:[%s201 + $0x1f8] sm:$0xff] %vm864, %v862
      %p929 = scmp.lt.s32.totalorder %s18, 7
      %s930 = scalar_select %p929, %s18, 7
      %p931 = scmp.lt.s32.totalorder %s19, 0
      %s932 = scalar_select %p931, %s19, 0
      %s933 = smul.addr %s930, 64
      %s934 = sadd.s32 %s932, %s933
      %s935 = smul.addr %s934, 8
      %s936 = scalar_lea.vmem %s3, %s935
      // Predicated region
      $region33: #{isa_block.3} parent=31 // pred_check
        %p937 = pneg %p116
      $region34: #{isa_block.3} parent=31 // pred_check_branch
        %939 = sbr.rel (%p937) target = $region36
      $region35: #{isa_block.3} parent=31 // pred_region
        _
      $region36: #{isa_block.3} parent=31 // pred_fallthru
        _
    $region32: #{isa_block.3} parent=5 // pred_fallthru
      _
    %p940 = scmp.le.s32.totalorder 2, %s9
    // Predicated region
    $region37: #{isa_block.3} parent=5 // pred_check
      %p941 = pneg %p940
    $region38: #{isa_block.3} parent=5 // pred_check_branch
      %943 = sbr.rel (%p941) target = $region40
    $region39: #{isa_block.3} parent=5 // pred_region
      %s944 = ssub.s32 %s9, 2
      // Predicated region
      $region41: #{isa_block.3} parent=39 // pred_check
        %p945 = pneg %p122
      $region42: #{isa_block.3} parent=39 // pred_check_branch
        %947 = sbr.rel (%p945) target = $region44
      $region43: #{isa_block.3} parent=39 // pred_region
        %p948 = scmp.lt.s32.totalorder %s20, 7
        %s949 = scalar_select %p948, %s20, 7
        %p950 = scmp.lt.s32.totalorder %s21, 0
        %s951 = scalar_select %p950, %s21, 0
        %s952 = smul.addr %s949, 64
        %s953 = sadd.s32 %s951, %s952
        %s954 = smul.addr %s953, 8
        %s955 = scalar_lea.vmem %s3, %s954
      $region44: #{isa_block.3} parent=39 // pred_fallthru
        _
    $region40: #{isa_block.3} parent=5 // pred_fallthru
      _
  $region6: #{isa_block.3} parent=0 // loop_footer
    %s13 = sadd.s32 1, %s9
  $region7: #{isa_block.3} parent=0 // loop_footer_branch
    %8 = sbr.rel target = $region3
  $region8: #{isa_block.3} parent=0 // loop_exit
    _

</llo_original>
